<compile_context>
chip_gen: v6e
topology: v6e:2x2x1
jax: 0.10.0
libtpu: 0.0.40
codegen_flags: <defaults>
</compile_context>

<pallas_src>
import functools
import math

import jax
import jax.numpy as jnp
from jax import lax
from jax.experimental import pallas as pl
from jax.experimental.pallas import tpu as pltpu


def _round_up(x, m):
    return (x + m - 1) // m * m


def apply_weight_norm(v, g):
    # PyTorch nn.utils.weight_norm default (dim=0): w[o] = g[o] * v[o] / ||v[o]||_F
    norm = jnp.sqrt(jnp.sum(v * v, axis=(1, 2), keepdims=True))
    return g[:, None, None] * v / norm


# ---------------------------------------------------------------------------
# Pallas kernel: one (batch, L-tile) grid step of the full ResidualBlock.
# ---------------------------------------------------------------------------
def residual_block_kernel(x1_ref, x2_ref, w_inc_ref, b_inc_ref,
                          v_ref, b_conv_ref, wd_ref, bd_ref, o_ref, *, tl, d):
    f32 = jnp.float32
    th = tl + d          # inception rows needed: outputs [t0-d, t0+tl)
    pad_l = d + 2        # left zero-pad applied to x in the wrapper

    # x window for this tile: (tl + tb2, Cin) bf16 (tile rows + right halo rows).
    xw = jnp.concatenate([x1_ref[0], x2_ref[0]], axis=0)

    # ---- stage 1: fused inception (k=1,2,4 convs -> 4 shift-aligned matmuls) ----
    h = jnp.dot(xw[0:th], w_inc_ref[0], preferred_element_type=f32)
    h = h + jnp.dot(xw[1:1 + th], w_inc_ref[1], preferred_element_type=f32)
    h = h + jnp.dot(xw[2:2 + th], w_inc_ref[2], preferred_element_type=f32)
    h = h + jnp.dot(xw[3:3 + th], w_inc_ref[3], preferred_element_type=f32)
    h = jnp.maximum(h + b_inc_ref[...], 0.0)
    # TODO(synk): F.dropout(0.5) (active by default in the PyTorch forward) is
    # omitted -> deterministic inference semantics.

    # Rows with global index < 0 correspond to the dilated conv's zero padding of
    # the inception output -> force them to zero (only the first L-tile is hit).
    t0 = pl.program_id(1) * tl
    row = lax.broadcasted_iota(jnp.int32, (th, 1), 0)
    h = jnp.where(row >= (d - t0), h, 0.0)
    hb = h.astype(jnp.bfloat16)

    # ---- stage 2: weight-normed dilated conv (k=2, dilation=d) + relu ----
    y = jnp.dot(hb[0:tl], v_ref[0], preferred_element_type=f32)        # h[t-d] tap
    y = y + jnp.dot(hb[d:d + tl], v_ref[1], preferred_element_type=f32)  # h[t] tap
    y = jnp.maximum(y + b_conv_ref[...], 0.0)

    # ---- stage 3: 1x1 downsample conv on x + residual add ----
    res = jnp.dot(xw[pad_l:pad_l + tl], wd_ref[...], preferred_element_type=f32)
    out = y + res + bd_ref[...]                                        # (tl, c2p) f32

    # Single lane-dense store, already in NCL layout (channels on sublanes).
    o_ref[0] = jnp.transpose(out)


# ---------------------------------------------------------------------------
# Wrapper: weight-norm, fusion/padding of weights, tiling, pallas_call.
# ---------------------------------------------------------------------------
def residual_block_forward(x_ncl, params, dilation, *, target_tile=512):
    """x_ncl: (N, Cin, L) float32 (PyTorch NCL). Returns (N, Cout, L) float32."""
    N, Cin, L = x_ncl.shape
    d = int(dilation)
    assert d >= 1
    bf16 = jnp.bfloat16

    c1 = params["b1"].shape[0]            # inception per-branch channels (32)
    c3 = 3 * c1                           # 96
    cout = params["b_down"].shape[0]
    c1p = _round_up(c3, 128)
    c2p = _round_up(cout, 128)

    # ---- effective (weight-normed) weights, fused per tap-shift, 128-padded ----
    w1 = apply_weight_norm(params["v1"], params["g1"])     # (c1, Cin, 1)
    w2 = apply_weight_norm(params["v2"], params["g2"])     # (c1, Cin, 2)
    w3 = apply_weight_norm(params["v3"], params["g3"])     # (c1, Cin, 4)

    # shift j means "uses x[s - 2 + j]"; conv1 -> shift 2, conv2 -> shifts 1,2,
    # conv3 -> shifts 0..3.  Columns: [conv1 | conv2 | conv3 | zero pad].
    w_inc = jnp.zeros((4, Cin, c1p), jnp.float32)
    w_inc = w_inc.at[2, :, 0:c1].set(w1[:, :, 0].T)
    w_inc = w_inc.at[1, :, c1:2 * c1].set(w2[:, :, 0].T)
    w_inc = w_inc.at[2, :, c1:2 * c1].set(w2[:, :, 1].T)
    for j in range(4):
        w_inc = w_inc.at[j, :, 2 * c1:3 * c1].set(w3[:, :, j].T)
    b_inc = jnp.zeros((1, c1p), jnp.float32)
    b_inc = b_inc.at[0, 0:c1].set(params["b1"])
    b_inc = b_inc.at[0, c1:2 * c1].set(params["b2"])
    b_inc = b_inc.at[0, 2 * c1:3 * c1].set(params["b3"])

    wc = apply_weight_norm(params["vc"], params["gc"])      # (cout, 96, 2)
    v = jnp.zeros((2, c1p, c2p), jnp.float32)
    v = v.at[0, 0:c3, 0:cout].set(wc[:, :, 0].T)
    v = v.at[1, 0:c3, 0:cout].set(wc[:, :, 1].T)
    b_conv = jnp.zeros((1, c2p), jnp.float32).at[0, 0:cout].set(params["bc"])

    wd = jnp.zeros((Cin, c2p), jnp.float32).at[:, 0:cout].set(params["w_down"][:, :, 0].T)
    bd = jnp.zeros((1, c2p), jnp.float32).at[0, 0:cout].set(params["b_down"])

    w_inc, v, wd = w_inc.astype(bf16), v.astype(bf16), wd.astype(bf16)

    # ---- L tiling ----
    tb2 = _round_up(d + 3, 16)                     # halo block (>= d+3 rows)
    tl_unit = (128 * tb2) // math.gcd(128, tb2)    # multiple of 128 and of tb2
    tl = tl_unit
    while tl < min(target_tile, _round_up(L, tl_unit)):
        tl *= 2
    num_tiles = -(-L // tl)
    l_out_pad = num_tiles * tl
    l_x_pad = (num_tiles + 1) * tl                 # extra tile of zeros for the halo block
    pad_l = d + 2
    pad_r = l_x_pad - pad_l - L
    th = tl + d

    # NCL -> NLC, bf16, small zero pad (left = conv halos, right = tile rounding).
    x_nlc = jnp.transpose(x_ncl, (0, 2, 1)).astype(bf16)
    x_pad = jnp.pad(x_nlc, ((0, 0), (pad_l, pad_r), (0, 0)))      # (N, l_x_pad, Cin)

    flops = 2 * N * num_tiles * (4 * th * Cin * c1p + 2 * tl * c1p * c2p + tl * Cin * c2p)
    bytes_accessed = (N * (l_x_pad + num_tiles * tb2) * Cin * 2
                      + N * c2p * l_out_pad * 4
                      + (w_inc.size + v.size + wd.size) * 2
                      + (b_inc.size + b_conv.size + bd.size) * 4)
    cost = pl.CostEstimate(flops=int(flops), transcendentals=0,
                           bytes_accessed=int(bytes_accessed))

    kernel = functools.partial(residual_block_kernel, tl=tl, d=d)
    out_pad = pl.pallas_call(
        kernel,
        out_shape=jax.ShapeDtypeStruct((N, c2p, l_out_pad), jnp.float32),
        grid=(N, num_tiles),
        in_specs=[
            pl.BlockSpec((1, tl, Cin), lambda n, i: (n, i, 0)),                       # tile rows
            pl.BlockSpec((1, tb2, Cin), lambda n, i: (n, (i + 1) * (tl // tb2), 0)),  # halo rows
            pl.BlockSpec((4, Cin, c1p), lambda n, i: (0, 0, 0)),                      # fused inception W
            pl.BlockSpec((1, c1p), lambda n, i: (0, 0)),                              # fused inception b
            pl.BlockSpec((2, c1p, c2p), lambda n, i: (0, 0, 0)),                      # dilated conv W
            pl.BlockSpec((1, c2p), lambda n, i: (0, 0)),                              # dilated conv b
            pl.BlockSpec((Cin, c2p), lambda n, i: (0, 0)),                            # downsample W
            pl.BlockSpec((1, c2p), lambda n, i: (0, 0)),                              # downsample b
        ],
        out_specs=pl.BlockSpec((1, c2p, tl), lambda n, i: (n, 0, i)),
        compiler_params=pltpu.CompilerParams(
            dimension_semantics=("parallel", "parallel"),
            vmem_limit_bytes=48 * 1024 * 1024),
        cost_estimate=cost,
    )(x_pad, x_pad, w_inc, b_inc, v, b_conv, wd, bd)

    return out_pad[:, :cout, :L]


residual_block_forward_jit = jax.jit(residual_block_forward, static_argnums=(2,))


# ---------------------------------------------------------------------------
# Pure-JAX reference (mirrors the PyTorch forward and the kernel's bf16 inputs).
# ---------------------------------------------------------------------------
def reference_forward(x_ncl, params, dilation):
    d = int(dilation)
    bf16 = jnp.bfloat16

    def conv1d(x, w, b, pad, dil=1):
        y = lax.conv_general_dilated(
            x.astype(bf16), w.astype(bf16), window_strides=(1,),
            padding=[(pad, pad)], rhs_dilation=(dil,),
            dimension_numbers=("NCH", "OIH", "NCH"),
            preferred_element_type=jnp.float32)
        return y + b[None, :, None]

    w1 = apply_weight_norm(params["v1"], params["g1"])
    w2 = apply_weight_norm(params["v2"], params["g2"])
    w3 = apply_weight_norm(params["v3"], params["g3"])
    y1 = conv1d(x_ncl, w1, params["b1"], 0)
    y2 = conv1d(x_ncl, w2, params["b2"], 1)
    y3 = conv1d(x_ncl, w3, params["b3"], 2)
    L = min(y1.shape[2], y2.shape[2], y3.shape[2])
    h = jnp.concatenate([y1[:, :, :L], y2[:, :, :L], y3[:, :, :L]], axis=1)
    h = jax.nn.relu(h).astype(bf16)                 # dropout omitted (inference)

    wc = apply_weight_norm(params["vc"], params["gc"])
    y = jax.nn.relu(conv1d(h, wc, params["bc"], d, dil=d))   # dropout omitted

    res = conv1d(x_ncl, params["w_down"], params["b_down"], 0)
    min_len = min(res.shape[2], y.shape[2])
    return y[:, :, :min_len] + res[:, :, :min_len]


if __name__ == "__main__":
    N, Cin, Cout, L, dilation = 2, 4, 8, 16, 2
    C1 = 32                       # InceptionLayer(input_channels, 32)

    key = jax.random.PRNGKey(0)
    ks = jax.random.split(key, 16)
    params = {
        "v1": jax.random.normal(ks[0], (C1, Cin, 1), jnp.float32),
        "g1": 0.5 + jax.random.uniform(ks[1], (C1,), jnp.float32),
        "b1": 0.1 * jax.random.normal(ks[2], (C1,), jnp.float32),
        "v2": jax.random.normal(ks[3], (C1, Cin, 2), jnp.float32),
        "g2": 0.5 + jax.random.uniform(ks[4], (C1,), jnp.float32),
        "b2": 0.1 * jax.random.normal(ks[5], (C1,), jnp.float32),
        "v3": jax.random.normal(ks[6], (C1, Cin, 4), jnp.float32),
        "g3": 0.5 + jax.random.uniform(ks[7], (C1,), jnp.float32),
        "b3": 0.1 * jax.random.normal(ks[8], (C1,), jnp.float32),
        "vc": jax.random.normal(ks[9], (Cout, 3 * C1, 2), jnp.float32),
        "gc": 0.5 + jax.random.uniform(ks[10], (Cout,), jnp.float32),
        "bc": 0.1 * jax.random.normal(ks[11], (Cout,), jnp.float32),
        "w_down": 0.3 * jax.random.normal(ks[12], (Cout, Cin, 1), jnp.float32),
        "b_down": 0.1 * jax.random.normal(ks[13], (Cout,), jnp.float32),
    }
    x = jax.random.normal(ks[14], (N, Cin, L), jnp.float32)

    out = residual_block_forward_jit(x, params, dilation)
    out = jax.block_until_ready(out)

    ref = reference_forward(x, params, dilation)
    assert out.shape == (N, Cout, L), out.shape
    max_err = float(jnp.max(jnp.abs(out - ref)))
    assert jnp.allclose(out, ref, atol=1e-2, rtol=1e-2), max_err

    print("KERNEL_OK")
</pallas_src>

<mosaic_0001>
module attributes {stable_mosaic.version = 11 : i64} {
  func.func @residual_block_kernel(%arg0: i32, %arg1: i32, %arg2: memref<1x128x4xbf16, #tpu.memory_space<vmem>>, %arg3: memref<1x16x4xbf16, #tpu.memory_space<vmem>>, %arg4: memref<4x4x128xbf16, #tpu.memory_space<vmem>>, %arg5: memref<1x128xf32, #tpu.memory_space<vmem>>, %arg6: memref<2x128x128xbf16, #tpu.memory_space<vmem>>, %arg7: memref<1x128xf32, #tpu.memory_space<vmem>>, %arg8: memref<4x128xbf16, #tpu.memory_space<vmem>>, %arg9: memref<1x128xf32, #tpu.memory_space<vmem>>, %arg10: memref<1x128x128xf32, #tpu.memory_space<vmem>>) attributes {dimension_semantics = [#tpu.dimension_semantics<parallel>, #tpu.dimension_semantics<parallel>], iteration_bounds = array<i64: 2, 1>, scalar_prefetch = 0 : i64, scratch_operands = 0 : i64, tpu.core_type = #tpu.core_type<tc>, window_params = [{transform_indices = @transform_0, window_bounds = array<i64: 1, 128, 4>}, {transform_indices = @transform_1, window_bounds = array<i64: 1, 16, 4>}, {pipeline_mode = #tpu.pipeline_mode<synchronous>, transform_indices = @transform_2, window_bounds = array<i64: 4, 4, 128>}, {pipeline_mode = #tpu.pipeline_mode<synchronous>, transform_indices = @transform_3, window_bounds = array<i64: 1, 128>}, {pipeline_mode = #tpu.pipeline_mode<synchronous>, transform_indices = @transform_4, window_bounds = array<i64: 2, 128, 128>}, {pipeline_mode = #tpu.pipeline_mode<synchronous>, transform_indices = @transform_5, window_bounds = array<i64: 1, 128>}, {pipeline_mode = #tpu.pipeline_mode<synchronous>, transform_indices = @transform_6, window_bounds = array<i64: 4, 128>}, {pipeline_mode = #tpu.pipeline_mode<synchronous>, transform_indices = @transform_7, window_bounds = array<i64: 1, 128>}, {transform_indices = @transform_8, window_bounds = array<i64: 1, 128, 128>}]} {
    %c0 = arith.constant 0 : index
    %c0_0 = arith.constant 0 : index
    %c0_1 = arith.constant 0 : index
    %0 = vector.load %arg2[%c0, %c0_0, %c0_1] : memref<1x128x4xbf16, #tpu.memory_space<vmem>>, vector<1x128x4xbf16>
    %1 = vector.shape_cast %0 : vector<1x128x4xbf16> to vector<128x4xbf16>
    %c0_2 = arith.constant 0 : index
    %c0_3 = arith.constant 0 : index
    %c0_4 = arith.constant 0 : index
    %2 = vector.load %arg3[%c0_2, %c0_3, %c0_4] : memref<1x16x4xbf16, #tpu.memory_space<vmem>>, vector<1x16x4xbf16>
    %3 = vector.shape_cast %2 : vector<1x16x4xbf16> to vector<16x4xbf16>
    %4 = tpu.concatenate %1, %3 in 0 : vector<128x4xbf16>, vector<16x4xbf16> -> vector<144x4xbf16>
    %5 = vector.extract_strided_slice %4 {offsets = [0, 0], sizes = [130, 4], strides = [1, 1]} : vector<144x4xbf16> to vector<130x4xbf16>
    %c0_5 = arith.constant 0 : index
    %c0_6 = arith.constant 0 : index
    %c0_7 = arith.constant 0 : index
    %6 = vector.load %arg4[%c0_5, %c0_6, %c0_7] : memref<4x4x128xbf16, #tpu.memory_space<vmem>>, vector<1x4x128xbf16>
    %7 = vector.shape_cast %6 : vector<1x4x128xbf16> to vector<4x128xbf16>
    %cst = arith.constant dense<0.000000e+00> : vector<130x128xf32>
    %8 = tpu.matmul %5, %7, %cst {dimension_numbers = #tpu.dot_dimension_numbers<[1], [0], [0], [1], [0, 0, 1, 1], [], []>} : vector<130x4xbf16>, vector<4x128xbf16>, vector<130x128xf32> -> vector<130x128xf32>
    %9 = vector.extract_strided_slice %4 {offsets = [1, 0], sizes = [130, 4], strides = [1, 1]} : vector<144x4xbf16> to vector<130x4xbf16>
    %c1 = arith.constant 1 : index
    %c0_8 = arith.constant 0 : index
    %c0_9 = arith.constant 0 : index
    %10 = vector.load %arg4[%c1, %c0_8, %c0_9] : memref<4x4x128xbf16, #tpu.memory_space<vmem>>, vector<1x4x128xbf16>
    %11 = vector.shape_cast %10 : vector<1x4x128xbf16> to vector<4x128xbf16>
    %cst_10 = arith.constant dense<0.000000e+00> : vector<130x128xf32>
    %12 = tpu.matmul %9, %11, %cst_10 {dimension_numbers = #tpu.dot_dimension_numbers<[1], [0], [0], [1], [0, 0, 1, 1], [], []>} : vector<130x4xbf16>, vector<4x128xbf16>, vector<130x128xf32> -> vector<130x128xf32>
    %13 = arith.addf %8, %12 : vector<130x128xf32>
    %14 = vector.extract_strided_slice %4 {offsets = [2, 0], sizes = [130, 4], strides = [1, 1]} : vector<144x4xbf16> to vector<130x4xbf16>
    %c2 = arith.constant 2 : index
    %c0_11 = arith.constant 0 : index
    %c0_12 = arith.constant 0 : index
    %15 = vector.load %arg4[%c2, %c0_11, %c0_12] : memref<4x4x128xbf16, #tpu.memory_space<vmem>>, vector<1x4x128xbf16>
    %16 = vector.shape_cast %15 : vector<1x4x128xbf16> to vector<4x128xbf16>
    %cst_13 = arith.constant dense<0.000000e+00> : vector<130x128xf32>
    %17 = tpu.matmul %14, %16, %cst_13 {dimension_numbers = #tpu.dot_dimension_numbers<[1], [0], [0], [1], [0, 0, 1, 1], [], []>} : vector<130x4xbf16>, vector<4x128xbf16>, vector<130x128xf32> -> vector<130x128xf32>
    %18 = arith.addf %13, %17 : vector<130x128xf32>
    %19 = vector.extract_strided_slice %4 {offsets = [3, 0], sizes = [130, 4], strides = [1, 1]} : vector<144x4xbf16> to vector<130x4xbf16>
    %c3 = arith.constant 3 : index
    %c0_14 = arith.constant 0 : index
    %c0_15 = arith.constant 0 : index
    %20 = vector.load %arg4[%c3, %c0_14, %c0_15] : memref<4x4x128xbf16, #tpu.memory_space<vmem>>, vector<1x4x128xbf16>
    %21 = vector.shape_cast %20 : vector<1x4x128xbf16> to vector<4x128xbf16>
    %cst_16 = arith.constant dense<0.000000e+00> : vector<130x128xf32>
    %22 = tpu.matmul %19, %21, %cst_16 {dimension_numbers = #tpu.dot_dimension_numbers<[1], [0], [0], [1], [0, 0, 1, 1], [], []>} : vector<130x4xbf16>, vector<4x128xbf16>, vector<130x128xf32> -> vector<130x128xf32>
    %23 = arith.addf %18, %22 : vector<130x128xf32>
    %c0_17 = arith.constant 0 : index
    %c0_18 = arith.constant 0 : index
    %24 = vector.load %arg5[%c0_17, %c0_18] : memref<1x128xf32, #tpu.memory_space<vmem>>, vector<1x128xf32>
    %25 = vector.broadcast %24 : vector<1x128xf32> to vector<130x128xf32>
    %26 = arith.addf %23, %25 : vector<130x128xf32>
    %cst_19 = arith.constant 0.000000e+00 : f32
    %27 = vector.broadcast %cst_19 : f32 to vector<130x128xf32>
    %28 = arith.maximumf %26, %27 : vector<130x128xf32>
    %c128_i32 = arith.constant 128 : i32
    %29 = arith.muli %arg1, %c128_i32 : i32
    %30 = tpu.iota {dimensions = array<i32: 0>} : vector<130x1xi32>
    %c2_i32 = arith.constant 2 : i32
    %31 = arith.subi %c2_i32, %29 : i32
    %32 = vector.broadcast %31 : i32 to vector<130x1xi32>
    %33 = arith.cmpi sge, %30, %32 : vector<130x1xi32>
    %cst_20 = arith.constant 0.000000e+00 : f32
    %34 = vector.shape_cast %33 : vector<130x1xi1> to vector<130x1xi1>
    %35 = vector.broadcast %34 : vector<130x1xi1> to vector<130x128xi1>
    %36 = vector.broadcast %cst_20 : f32 to vector<130x128xf32>
    %37 = arith.select %35, %28, %36 : vector<130x128xi1>, vector<130x128xf32>
    %38 = arith.truncf %37 : vector<130x128xf32> to vector<130x128xbf16>
    %39 = vector.extract_strided_slice %38 {offsets = [0, 0], sizes = [128, 128], strides = [1, 1]} : vector<130x128xbf16> to vector<128x128xbf16>
    %c0_21 = arith.constant 0 : index
    %c0_22 = arith.constant 0 : index
    %c0_23 = arith.constant 0 : index
    %40 = vector.load %arg6[%c0_21, %c0_22, %c0_23] : memref<2x128x128xbf16, #tpu.memory_space<vmem>>, vector<1x128x128xbf16>
    %41 = vector.shape_cast %40 : vector<1x128x128xbf16> to vector<128x128xbf16>
    %cst_24 = arith.constant dense<0.000000e+00> : vector<128x128xf32>
    %42 = tpu.matmul %39, %41, %cst_24 {dimension_numbers = #tpu.dot_dimension_numbers<[1], [0], [0], [1], [0, 0, 1, 1], [], []>} : vector<128x128xbf16>, vector<128x128xbf16>, vector<128x128xf32> -> vector<128x128xf32>
    %43 = vector.extract_strided_slice %38 {offsets = [2, 0], sizes = [128, 128], strides = [1, 1]} : vector<130x128xbf16> to vector<128x128xbf16>
    %c1_25 = arith.constant 1 : index
    %c0_26 = arith.constant 0 : index
    %c0_27 = arith.constant 0 : index
    %44 = vector.load %arg6[%c1_25, %c0_26, %c0_27] : memref<2x128x128xbf16, #tpu.memory_space<vmem>>, vector<1x128x128xbf16>
    %45 = vector.shape_cast %44 : vector<1x128x128xbf16> to vector<128x128xbf16>
    %cst_28 = arith.constant dense<0.000000e+00> : vector<128x128xf32>
    %46 = tpu.matmul %43, %45, %cst_28 {dimension_numbers = #tpu.dot_dimension_numbers<[1], [0], [0], [1], [0, 0, 1, 1], [], []>} : vector<128x128xbf16>, vector<128x128xbf16>, vector<128x128xf32> -> vector<128x128xf32>
    %47 = arith.addf %42, %46 : vector<128x128xf32>
    %c0_29 = arith.constant 0 : index
    %c0_30 = arith.constant 0 : index
    %48 = vector.load %arg7[%c0_29, %c0_30] : memref<1x128xf32, #tpu.memory_space<vmem>>, vector<1x128xf32>
    %49 = vector.broadcast %48 : vector<1x128xf32> to vector<128x128xf32>
    %50 = arith.addf %47, %49 : vector<128x128xf32>
    %cst_31 = arith.constant 0.000000e+00 : f32
    %51 = vector.broadcast %cst_31 : f32 to vector<128x128xf32>
    %52 = arith.maximumf %50, %51 : vector<128x128xf32>
    %53 = vector.extract_strided_slice %4 {offsets = [4, 0], sizes = [128, 4], strides = [1, 1]} : vector<144x4xbf16> to vector<128x4xbf16>
    %c0_32 = arith.constant 0 : index
    %c0_33 = arith.constant 0 : index
    %54 = vector.load %arg8[%c0_32, %c0_33] : memref<4x128xbf16, #tpu.memory_space<vmem>>, vector<4x128xbf16>
    %cst_34 = arith.constant dense<0.000000e+00> : vector<128x128xf32>
    %55 = tpu.matmul %53, %54, %cst_34 {dimension_numbers = #tpu.dot_dimension_numbers<[1], [0], [0], [1], [0, 0, 1, 1], [], []>} : vector<128x4xbf16>, vector<4x128xbf16>, vector<128x128xf32> -> vector<128x128xf32>
    %56 = arith.addf %52, %55 : vector<128x128xf32>
    %c0_35 = arith.constant 0 : index
    %c0_36 = arith.constant 0 : index
    %57 = vector.load %arg9[%c0_35, %c0_36] : memref<1x128xf32, #tpu.memory_space<vmem>>, vector<1x128xf32>
    %58 = vector.broadcast %57 : vector<1x128xf32> to vector<128x128xf32>
    %59 = arith.addf %56, %58 : vector<128x128xf32>
    %60 = tpu.transpose %59, [1, 0] : vector<128x128xf32> -> vector<128x128xf32>
    %c0_37 = arith.constant 0 : index
    %c0_38 = arith.constant 0 : index
    %c0_39 = arith.constant 0 : index
    %61 = vector.load %arg10[%c0_37, %c0_38, %c0_39] : memref<1x128x128xf32, #tpu.memory_space<vmem>>, vector<1x128x128xf32>
    %62 = vector.shape_cast %61 : vector<1x128x128xf32> to vector<128x128xf32>
    %63 = vector.shape_cast %60 : vector<128x128xf32> to vector<1x128x128xf32>
    tpu.vector_store %arg10[%c0_37, %c0_38, %c0_39], %63 {strides = array<i32>} : memref<1x128x128xf32, #tpu.memory_space<vmem>>, vector<1x128x128xf32>,
    return
  }
  func.func @transform_0(%arg0: i32, %arg1: i32) -> (i32, i32, i32) {
    %c0_i32 = arith.constant 0 : i32
    %c0_i32_0 = arith.constant 0 : i32
    return %arg0, %arg1, %c0_i32 : i32, i32, i32
  }
  func.func @transform_1(%arg0: i32, %arg1: i32) -> (i32, i32, i32) {
    %c1_i32 = arith.constant 1 : i32
    %0 = arith.addi %arg1, %c1_i32 : i32
    %c8_i32 = arith.constant 8 : i32
    %1 = arith.muli %0, %c8_i32 : i32
    %c0_i32 = arith.constant 0 : i32
    %c0_i32_0 = arith.constant 0 : i32
    return %arg0, %1, %c0_i32 : i32, i32, i32
  }
  func.func @transform_2(%arg0: i32, %arg1: i32) -> (i32, i32, i32) {
    %c0_i32 = arith.constant 0 : i32
    %c0_i32_0 = arith.constant 0 : i32
    %c0_i32_1 = arith.constant 0 : i32
    %c0_i32_2 = arith.constant 0 : i32
    return %c0_i32, %c0_i32_0, %c0_i32_1 : i32, i32, i32
  }
  func.func @transform_3(%arg0: i32, %arg1: i32) -> (i32, i32) {
    %c0_i32 = arith.constant 0 : i32
    %c0_i32_0 = arith.constant 0 : i32
    %c0_i32_1 = arith.constant 0 : i32
    return %c0_i32, %c0_i32_0 : i32, i32
  }
  func.func @transform_4(%arg0: i32, %arg1: i32) -> (i32, i32, i32) {
    %c0_i32 = arith.constant 0 : i32
    %c0_i32_0 = arith.constant 0 : i32
    %c0_i32_1 = arith.constant 0 : i32
    %c0_i32_2 = arith.constant 0 : i32
    return %c0_i32, %c0_i32_0, %c0_i32_1 : i32, i32, i32
  }
  func.func @transform_5(%arg0: i32, %arg1: i32) -> (i32, i32) {
    %c0_i32 = arith.constant 0 : i32
    %c0_i32_0 = arith.constant 0 : i32
    %c0_i32_1 = arith.constant 0 : i32
    return %c0_i32, %c0_i32_0 : i32, i32
  }
  func.func @transform_6(%arg0: i32, %arg1: i32) -> (i32, i32) {
    %c0_i32 = arith.constant 0 : i32
    %c0_i32_0 = arith.constant 0 : i32
    %c0_i32_1 = arith.constant 0 : i32
    return %c0_i32, %c0_i32_0 : i32, i32
  }
  func.func @transform_7(%arg0: i32, %arg1: i32) -> (i32, i32) {
    %c0_i32 = arith.constant 0 : i32
    %c0_i32_0 = arith.constant 0 : i32
    %c0_i32_1 = arith.constant 0 : i32
    return %c0_i32, %c0_i32_0 : i32, i32
  }
  func.func @transform_8(%arg0: i32, %arg1: i32) -> (i32, i32, i32) {
    %c0_i32 = arith.constant 0 : i32
    %c0_i32_0 = arith.constant 0 : i32
    return %arg0, %c0_i32, %arg1 : i32, i32, i32
  }
}

</mosaic_0001>

<llo_original>
// kernel: residual_block_forward.1
$region0: #{residual_block_forward.1}
  #allocation0 [shape = 'u32[]', space=smem, size = 0x4, offset = 0x4, fixed_abs, tag = 'smem constant byte address 0x4 - core index']
  #allocation1 [shape = 'u32[144,128]{1,0:T(1,128)}', space=vmem, size = 0x12000, scoped, tag = 'internal scratch']
  %s0 = inlined_call_operand.vmem [shape: bf16[2,256,4], index: 0, kind: input, shape index: {}, may-alias: {0,1}]
  %s1 = inlined_call_operand.vmem [shape: bf16[2,256,4], index: 1, kind: input, shape index: {}, may-alias: {0,1}]
  %s2 = inlined_call_operand.vmem [shape: bf16[4,4,128], index: 2, kind: input, shape index: {}]
  %s3 = inlined_call_operand.vmem [shape: f32[1,128], index: 3, kind: input, shape index: {}]
  %s4 = inlined_call_operand.vmem [shape: bf16[2,128,128], index: 4, kind: input, shape index: {}]
  %s5 = inlined_call_operand.vmem [shape: f32[1,128], index: 5, kind: input, shape index: {}]
  %s6 = inlined_call_operand.vmem [shape: bf16[4,128], index: 6, kind: input, shape index: {}]
  %s7 = inlined_call_operand.vmem [shape: f32[1,128], index: 7, kind: input, shape index: {}]
  %s8 = inlined_call_operand.vmem [shape: f32[2,128,128], index: 8, kind: output, shape index: {}]
  %s9 = sld [smem:[#allocation0]]
  $region65: #{residual_block_forward.1} parent=0
    _
  %s11 = ssub.s32 1, %s9
  %s12 = scalar_select 0, %s11, %s9
  loop: start=0, step=1, limit=4
  $region2: #{residual_block_forward.1} parent=0 // loop_pre_header
    _
  $region3: #{residual_block_forward.1} parent=0 // loop_header
    %s14 = sphi 0, %s18
    %p15 = scmp.ge.s32.totalorder %s14, 4
    %s21 = sphi 0, %s33
    %s22 = sphi 0, %s29
    %s23 = sphi 0, %s21
    %s24 = sphi 0, %s22
    %s25 = sphi 0, %s23
    %s26 = sphi 0, %s24
    %s38 = sphi 0, %s40
    %s41 = sphi 0, %s38
    %s42 = sphi 0, %s41
    %s58 = sphi 0, %s42
    %s70 = sphi 0, %s72
    %s73 = sphi 0, %s70
    %s74 = sphi 0, %s73
    %s90 = sphi 0, %s74
    %s94 = sphi 0, %s94
    %s96 = sphi 0, %s94
    %s97 = sphi 0, %s96
    %s111 = sphi 0, %s97
    %s115 = sphi 0, %s115
    %s117 = sphi 0, %s115
    %s118 = sphi 0, %s117
    %s132 = sphi 0, %s118
    %s136 = sphi 0, %s136
    %s138 = sphi 0, %s136
    %s139 = sphi 0, %s138
    %s153 = sphi 0, %s139
    %s157 = sphi 0, %s157
    %s159 = sphi 0, %s157
    %s160 = sphi 0, %s159
    %s174 = sphi 0, %s160
    %s178 = sphi 0, %s178
    %s180 = sphi 0, %s178
    %s181 = sphi 0, %s180
    %s195 = sphi 0, %s181
    %s199 = sphi 0, %s199
    %s201 = sphi 0, %s199
    %s202 = sphi 0, %s201
    %s216 = sphi 0, %s202
    %s224 = sphi 0, %s226
    %s227 = sphi 0, %s224
    %s228 = sphi 0, %s227
    %s244 = sphi 0, %s228
  $region4: #{residual_block_forward.1} parent=0 // loop_header_branch
    %17 = sbr.rel (%p15) target = $region8
  $region5: #{residual_block_forward.1} parent=0 // loop_body
    %s19 = ssub.s32 %s14, 1
    %s20 = ssub.s32 %s14, 2
    %s27 = sadd.s32 1, %s22
    %p28 = scmp.ge.s32.totalorder %s27, 1
    %s29 = scalar_select %p28, 0, %s27
    %s30 = sadd.s32 1, %s21
    %s31 = scalar_select %p28, %s30, %s21
    %p32 = scmp.ge.s32.totalorder %s31, 2
    %s33 = scalar_select %p32, 0, %s31
    %s34 = ssub.s32 %s21, %s33
    %s35 = ssub.s32 %s22, %s29
    %s36 = sor.u32 %s34, %s35
    %p37 = scmp.eq.s32.totalorder %s36, 0
    %s39 = sadd.s32 %s38, 1
    %s40 = scalar_select %p37, %s38, %s39
    %p43 = pneg %p37
    %p44 = scmp.eq.s32.totalorder %s14, 1
    %p45 = por %p43, %p44
    %p46 = scmp.ne.s32.totalorder %s38, %s41
    %p47 = scmp.eq.s32.totalorder %s14, 0
    %p48 = por %p46, %p47
    %p49 = scmp.ne.s32.totalorder %s38, %s41
    %p50 = scmp.eq.s32.totalorder %s19, 1
    %p51 = por %p49, %p50
    %p52 = scmp.ne.s32.totalorder %s41, %s42
    %p53 = scmp.eq.s32.totalorder %s19, 0
    %p54 = por %p52, %p53
    %p55 = scmp.ne.s32.totalorder %s41, %s42
    %p56 = scmp.eq.s32.totalorder %s20, 1
    %p57 = por %p55, %p56
    %p59 = scmp.ne.s32.totalorder %s42, %s58
    %p60 = scmp.eq.s32.totalorder %s20, 0
    %p61 = por %p59, %p60
    %s62 = sadd.s32 %s22, 1
    %s63 = smul.u32 %s62, 8
    %s64 = sadd.s32 %s29, 1
    %s65 = smul.u32 %s64, 8
    %s66 = ssub.s32 %s21, %s33
    %s67 = ssub.s32 %s63, %s65
    %s68 = sor.u32 %s66, %s67
    %p69 = scmp.eq.s32.totalorder %s68, 0
    %s71 = sadd.s32 %s70, 1
    %s72 = scalar_select %p69, %s70, %s71
    %p75 = pneg %p69
    %p76 = scmp.eq.s32.totalorder %s14, 1
    %p77 = por %p75, %p76
    %p78 = scmp.ne.s32.totalorder %s70, %s73
    %p79 = scmp.eq.s32.totalorder %s14, 0
    %p80 = por %p78, %p79
    %p81 = scmp.ne.s32.totalorder %s70, %s73
    %p82 = scmp.eq.s32.totalorder %s19, 1
    %p83 = por %p81, %p82
    %p84 = scmp.ne.s32.totalorder %s73, %s74
    %p85 = scmp.eq.s32.totalorder %s19, 0
    %p86 = por %p84, %p85
    %p87 = scmp.ne.s32.totalorder %s73, %s74
    %p88 = scmp.eq.s32.totalorder %s20, 1
    %p89 = por %p87, %p88
    %p91 = scmp.ne.s32.totalorder %s74, %s90
    %p92 = scmp.eq.s32.totalorder %s20, 0
    %p93 = por %p91, %p92
    %s95 = sadd.s32 %s94, 1
    %p98 = scmp.eq.s32.totalorder %s14, 1
    %p99 = scmp.ne.s32.totalorder %s94, %s96
    %p100 = scmp.eq.s32.totalorder %s14, 0
    %p101 = por %p99, %p100
    %p102 = scmp.ne.s32.totalorder %s94, %s96
    %p103 = scmp.eq.s32.totalorder %s19, 1
    %p104 = por %p102, %p103
    %p105 = scmp.ne.s32.totalorder %s96, %s97
    %p106 = scmp.eq.s32.totalorder %s19, 0
    %p107 = por %p105, %p106
    %p108 = scmp.ne.s32.totalorder %s96, %s97
    %p109 = scmp.eq.s32.totalorder %s20, 1
    %p110 = por %p108, %p109
    %p112 = scmp.ne.s32.totalorder %s97, %s111
    %p113 = scmp.eq.s32.totalorder %s20, 0
    %p114 = por %p112, %p113
    %s116 = sadd.s32 %s115, 1
    %p119 = scmp.eq.s32.totalorder %s14, 1
    %p120 = scmp.ne.s32.totalorder %s115, %s117
    %p121 = scmp.eq.s32.totalorder %s14, 0
    %p122 = por %p120, %p121
    %p123 = scmp.ne.s32.totalorder %s115, %s117
    %p124 = scmp.eq.s32.totalorder %s19, 1
    %p125 = por %p123, %p124
    %p126 = scmp.ne.s32.totalorder %s117, %s118
    %p127 = scmp.eq.s32.totalorder %s19, 0
    %p128 = por %p126, %p127
    %p129 = scmp.ne.s32.totalorder %s117, %s118
    %p130 = scmp.eq.s32.totalorder %s20, 1
    %p131 = por %p129, %p130
    %p133 = scmp.ne.s32.totalorder %s118, %s132
    %p134 = scmp.eq.s32.totalorder %s20, 0
    %p135 = por %p133, %p134
    %s137 = sadd.s32 %s136, 1
    %p140 = scmp.eq.s32.totalorder %s14, 1
    %p141 = scmp.ne.s32.totalorder %s136, %s138
    %p142 = scmp.eq.s32.totalorder %s14, 0
    %p143 = por %p141, %p142
    %p144 = scmp.ne.s32.totalorder %s136, %s138
    %p145 = scmp.eq.s32.totalorder %s19, 1
    %p146 = por %p144, %p145
    %p147 = scmp.ne.s32.totalorder %s138, %s139
    %p148 = scmp.eq.s32.totalorder %s19, 0
    %p149 = por %p147, %p148
    %p150 = scmp.ne.s32.totalorder %s138, %s139
    %p151 = scmp.eq.s32.totalorder %s20, 1
    %p152 = por %p150, %p151
    %p154 = scmp.ne.s32.totalorder %s139, %s153
    %p155 = scmp.eq.s32.totalorder %s20, 0
    %p156 = por %p154, %p155
    %s158 = sadd.s32 %s157, 1
    %p161 = scmp.eq.s32.totalorder %s14, 1
    %p162 = scmp.ne.s32.totalorder %s157, %s159
    %p163 = scmp.eq.s32.totalorder %s14, 0
    %p164 = por %p162, %p163
    %p165 = scmp.ne.s32.totalorder %s157, %s159
    %p166 = scmp.eq.s32.totalorder %s19, 1
    %p167 = por %p165, %p166
    %p168 = scmp.ne.s32.totalorder %s159, %s160
    %p169 = scmp.eq.s32.totalorder %s19, 0
    %p170 = por %p168, %p169
    %p171 = scmp.ne.s32.totalorder %s159, %s160
    %p172 = scmp.eq.s32.totalorder %s20, 1
    %p173 = por %p171, %p172
    %p175 = scmp.ne.s32.totalorder %s160, %s174
    %p176 = scmp.eq.s32.totalorder %s20, 0
    %p177 = por %p175, %p176
    %s179 = sadd.s32 %s178, 1
    %p182 = scmp.eq.s32.totalorder %s14, 1
    %p183 = scmp.ne.s32.totalorder %s178, %s180
    %p184 = scmp.eq.s32.totalorder %s14, 0
    %p185 = por %p183, %p184
    %p186 = scmp.ne.s32.totalorder %s178, %s180
    %p187 = scmp.eq.s32.totalorder %s19, 1
    %p188 = por %p186, %p187
    %p189 = scmp.ne.s32.totalorder %s180, %s181
    %p190 = scmp.eq.s32.totalorder %s19, 0
    %p191 = por %p189, %p190
    %p192 = scmp.ne.s32.totalorder %s180, %s181
    %p193 = scmp.eq.s32.totalorder %s20, 1
    %p194 = por %p192, %p193
    %p196 = scmp.ne.s32.totalorder %s181, %s195
    %p197 = scmp.eq.s32.totalorder %s20, 0
    %p198 = por %p196, %p197
    %s200 = sadd.s32 %s199, 1
    %p203 = scmp.eq.s32.totalorder %s14, 1
    %p204 = scmp.ne.s32.totalorder %s199, %s201
    %p205 = scmp.eq.s32.totalorder %s14, 0
    %p206 = por %p204, %p205
    %p207 = scmp.ne.s32.totalorder %s199, %s201
    %p208 = scmp.eq.s32.totalorder %s19, 1
    %p209 = por %p207, %p208
    %p210 = scmp.ne.s32.totalorder %s201, %s202
    %p211 = scmp.eq.s32.totalorder %s19, 0
    %p212 = por %p210, %p211
    %p213 = scmp.ne.s32.totalorder %s201, %s202
    %p214 = scmp.eq.s32.totalorder %s20, 1
    %p215 = por %p213, %p214
    %p217 = scmp.ne.s32.totalorder %s202, %s216
    %p218 = scmp.eq.s32.totalorder %s20, 0
    %p219 = por %p217, %p218
    %s220 = ssub.s32 %s21, %s33
    %s221 = ssub.s32 %s22, %s29
    %s222 = sor.u32 %s220, %s221
    %p223 = scmp.eq.s32.totalorder %s222, 0
    %s225 = sadd.s32 %s224, 1
    %s226 = scalar_select %p223, %s224, %s225
    %p229 = pneg %p223
    %p230 = scmp.eq.s32.totalorder %s14, 1
    %p231 = por %p229, %p230
    %p232 = scmp.ne.s32.totalorder %s224, %s227
    %p233 = scmp.eq.s32.totalorder %s14, 0
    %p234 = por %p232, %p233
    %p235 = scmp.ne.s32.totalorder %s224, %s227
    %p236 = scmp.eq.s32.totalorder %s19, 1
    %p237 = por %p235, %p236
    %p238 = scmp.ne.s32.totalorder %s227, %s228
    %p239 = scmp.eq.s32.totalorder %s19, 0
    %p240 = por %p238, %p239
    %p241 = scmp.ne.s32.totalorder %s227, %s228
    %p242 = scmp.eq.s32.totalorder %s20, 1
    %p243 = por %p241, %p242
    %p245 = scmp.ne.s32.totalorder %s228, %s244
    %p246 = scmp.eq.s32.totalorder %s20, 0
    %p247 = por %p245, %p246
    %p248 = scmp.le.s32.totalorder 1, %s14
    %p249 = scmp.lt.s32.totalorder %s14, 3
    %p250 = pnand %p248, %p249
    %p251 = pneg %p250
    // Predicated region
    $region9: #{residual_block_forward.1} parent=5 // pred_check
      _
    $region10: #{residual_block_forward.1} parent=5 // pred_check_branch
      %253 = sbr.rel (%p250) target = $region12
    $region11: #{residual_block_forward.1} parent=5 // pred_region
      %s254 = ssub.s32 %s14, 1
      // Predicated region
      $region13: #{residual_block_forward.1} parent=11 // pred_check
        %p255 = pneg %p107
      $region14: #{residual_block_forward.1} parent=11 // pred_check_branch
        %257 = sbr.rel (%p255) target = $region16
      $region15: #{residual_block_forward.1} parent=11 // pred_region
        _
      $region16: #{residual_block_forward.1} parent=11 // pred_fallthru
        _
      // Predicated region
      $region17: #{residual_block_forward.1} parent=11 // pred_check
        %p258 = pneg %p128
      $region18: #{residual_block_forward.1} parent=11 // pred_check_branch
        %260 = sbr.rel (%p258) target = $region20
      $region19: #{residual_block_forward.1} parent=11 // pred_region
        _
      $region20: #{residual_block_forward.1} parent=11 // pred_fallthru
        _
      // Predicated region
      $region21: #{residual_block_forward.1} parent=11 // pred_check
        %p261 = pneg %p149
      $region22: #{residual_block_forward.1} parent=11 // pred_check_branch
        %263 = sbr.rel (%p261) target = $region24
      $region23: #{residual_block_forward.1} parent=11 // pred_region
        _
      $region24: #{residual_block_forward.1} parent=11 // pred_fallthru
        _
      // Predicated region
      $region25: #{residual_block_forward.1} parent=11 // pred_check
        %p264 = pneg %p170
      $region26: #{residual_block_forward.1} parent=11 // pred_check_branch
        %266 = sbr.rel (%p264) target = $region28
      $region27: #{residual_block_forward.1} parent=11 // pred_region
        _
      $region28: #{residual_block_forward.1} parent=11 // pred_fallthru
        _
      // Predicated region
      $region29: #{residual_block_forward.1} parent=11 // pred_check
        %p267 = pneg %p191
      $region30: #{residual_block_forward.1} parent=11 // pred_check_branch
        %269 = sbr.rel (%p267) target = $region32
      $region31: #{residual_block_forward.1} parent=11 // pred_region
        _
      $region32: #{residual_block_forward.1} parent=11 // pred_fallthru
        _
      // Predicated region
      $region33: #{residual_block_forward.1} parent=11 // pred_check
        %p270 = pneg %p212
      $region34: #{residual_block_forward.1} parent=11 // pred_check_branch
        %272 = sbr.rel (%p270) target = $region36
      $region35: #{residual_block_forward.1} parent=11 // pred_region
        _
      $region36: #{residual_block_forward.1} parent=11 // pred_fallthru
        _
    $region12: #{residual_block_forward.1} parent=5 // pred_fallthru
      _
    %p273 = scmp.lt.s32.totalorder %s14, 2
    // Predicated region
    $region37: #{residual_block_forward.1} parent=5 // pred_check
      %p274 = pneg %p273
    $region38: #{residual_block_forward.1} parent=5 // pred_check_branch
      %276 = sbr.rel (%p274) target = $region40
    $region39: #{residual_block_forward.1} parent=5 // pred_region
      // Predicated region
      $region41: #{residual_block_forward.1} parent=39 // pred_check
        %p277 = pneg %p48
      $region42: #{residual_block_forward.1} parent=39 // pred_check_branch
        %279 = sbr.rel (%p277) target = $region44
      $region43: #{residual_block_forward.1} parent=39 // pred_region
        %s280 = smul.u32 16, %s22
        %p281 = scmp.lt.s32.totalorder %s21, 1
        %s282 = scalar_select %p281, %s21, 1
        %p283 = scmp.lt.s32.totalorder %s280, 31
        %s284 = scalar_select %p283, %s280, 31
        %s285 = smul.addr %s282, 32
        %s286 = sadd.s32 %s284, %s285
        %s287 = smul.addr %s286, 4
        %s288 = scalar_lea.vmem %s0, %s287
        %s289 = smul.u32 16, %s22
      $region44: #{residual_block_forward.1} parent=39 // pred_fallthru
        _
      // Predicated region
      $region45: #{residual_block_forward.1} parent=39 // pred_check
        %p290 = pneg %p80
      $region46: #{residual_block_forward.1} parent=39 // pred_check_branch
        %292 = sbr.rel (%p290) target = $region48
      $region47: #{residual_block_forward.1} parent=39 // pred_region
        %s293 = sadd.s32 %s22, 1
        %s294 = smul.u32 %s293, 8
        %s295 = smul.u32 2, %s294
        %p296 = scmp.lt.s32.totalorder %s21, 1
        %s297 = scalar_select %p296, %s21, 1
        %p298 = scmp.lt.s32.totalorder %s295, 31
        %s299 = scalar_select %p298, %s295, 31
        %s300 = smul.addr %s297, 32
        %s301 = sadd.s32 %s299, %s300
        %s302 = smul.addr %s301, 4
        %s303 = scalar_lea.vmem %s1, %s302
        %s304 = sadd.s32 %s22, 1
        %s305 = smul.u32 %s304, 8
        %s306 = smul.u32 2, %s305
      $region48: #{residual_block_forward.1} parent=39 // pred_fallthru
        _
    $region40: #{residual_block_forward.1} parent=5 // pred_fallthru
      _
    %p307 = scmp.le.s32.totalorder 1, %s14
    %p308 = scmp.lt.s32.totalorder %s14, 3
    %p309 = pnand %p307, %p308
    %p310 = pneg %p309
    // Predicated region
    $region49: #{residual_block_forward.1} parent=5 // pred_check
      _
    $region50: #{residual_block_forward.1} parent=5 // pred_check_branch
      %312 = sbr.rel (%p309) target = $region52
    $region51: #{residual_block_forward.1} parent=5 // pred_region
      %s313 = ssub.s32 %s14, 1
      %s314 = smul.u32 16, %s24
      %p315 = scmp.lt.s32.totalorder %s23, 1
      %s316 = scalar_select %p315, %s23, 1
      %p317 = scmp.lt.s32.totalorder %s314, 31
      %s318 = scalar_select %p317, %s314, 31
      %s319 = smul.addr %s316, 32
      %s320 = sadd.s32 %s318, %s319
      %s321 = smul.addr %s320, 4
      %s322 = scalar_lea.vmem %s0, %s321
      %p323 = pneg %p54
      %p324 = pneg %p51
      %s325 = sadd.s32 %s24, 1
      %s326 = smul.u32 %s325, 8
      %s327 = smul.u32 2, %s326
      %p328 = scmp.lt.s32.totalorder %s23, 1
      %s329 = scalar_select %p328, %s23, 1
      %p330 = scmp.lt.s32.totalorder %s327, 31
      %s331 = scalar_select %p330, %s327, 31
      %s332 = smul.addr %s329, 32
      %s333 = sadd.s32 %s331, %s332
      %s334 = smul.addr %s333, 4
      %s335 = scalar_lea.vmem %s1, %s334
      %p336 = pneg %p86
      %p337 = pneg %p83
      %p338 = pneg %p107
      %p339 = pneg %p104
      %p340 = pneg %p128
      %p341 = pneg %p125
      %p342 = pneg %p149
      %p343 = pneg %p146
      %p344 = pneg %p170
      %p345 = pneg %p167
      %p346 = pneg %p191
      %p347 = pneg %p188
      %p348 = pneg %p212
      %p349 = pneg %p209
      %p350 = pneg %p240
      %p351 = pneg %p237
      %p352 = scmp.lt.s32.totalorder %s23, 1
      %s353 = scalar_select %p352, %s23, 1
      %p354 = scmp.lt.s32.totalorder %s24, 0
      %s355 = scalar_select %p354, %s24, 0
      %s356 = smul.addr %s353, 16
      %s357 = sadd.s32 %s355, %s356
      %s358 = smul.addr %s357, 8
      %s359 = scalar_lea.vmem %s8, %s358
      %s360 = smul.u32 16, %s24
      %p361 = scmp.lt.s32.totalorder %s23, 1
      %s362 = scalar_select %p361, %s23, 1
      %p363 = scmp.lt.s32.totalorder %s360, 31
      %s364 = scalar_select %p363, %s360, 31
      %s365 = smul.addr %s362, 32
      %s366 = sadd.s32 %s364, %s365
      %s367 = smul.addr %s366, 4
      %s368 = scalar_lea.vmem %s0, %s367
      %s369 = smul.u32 16, %s24
      %s370 = sadd.s32 %s24, 1
      %s371 = smul.u32 %s370, 8
      %s372 = smul.u32 2, %s371
      %p373 = scmp.lt.s32.totalorder %s23, 1
      %s374 = scalar_select %p373, %s23, 1
      %p375 = scmp.lt.s32.totalorder %s372, 31
      %s376 = scalar_select %p375, %s372, 31
      %s377 = smul.addr %s374, 32
      %s378 = sadd.s32 %s376, %s377
      %s379 = smul.addr %s378, 4
      %s380 = scalar_lea.vmem %s1, %s379
      %s381 = sadd.s32 %s24, 1
      %s382 = smul.u32 %s381, 8
      %s383 = smul.u32 2, %s382
      %p384 = scmp.lt.s32.totalorder %s23, 1
      %s385 = scalar_select %p384, %s23, 1
      %p386 = scmp.lt.s32.totalorder %s24, 0
      %s387 = scalar_select %p386, %s24, 0
      %s388 = smul.addr %s385, 16
      %s389 = sadd.s32 %s387, %s388
      %s390 = smul.addr %s389, 8
      %s391 = scalar_lea.vmem %s8, %s390
      %v393 = vld [vmem:[%s368] sm:$0xf]
      %v394 = vld [vmem:[%s368 + $0x4] sm:$0xf]
      %v395 = vld [vmem:[%s368 + $0x8] sm:$0xf]
      %v396 = vld [vmem:[%s368 + $0xc] sm:$0xf]
      %v397 = vld [vmem:[%s368 + $0x10] sm:$0xf]
      %v398 = vld [vmem:[%s368 + $0x14] sm:$0xf]
      %v399 = vld [vmem:[%s368 + $0x18] sm:$0xf]
      %v400 = vld [vmem:[%s368 + $0x1c] sm:$0xf]
      %v401 = vld [vmem:[%s368 + $0x20] sm:$0xf]
      %v402 = vld [vmem:[%s368 + $0x24] sm:$0xf]
      %v403 = vld [vmem:[%s368 + $0x28] sm:$0xf]
      %v404 = vld [vmem:[%s368 + $0x2c] sm:$0xf]
      %v405 = vld [vmem:[%s368 + $0x30] sm:$0xf]
      %v406 = vld [vmem:[%s368 + $0x34] sm:$0xf]
      %v407 = vld [vmem:[%s368 + $0x38] sm:$0xf]
      %v408 = vld [vmem:[%s368 + $0x3c] sm:$0xf]
      %v409 = vld [vmem:[%s380] sm:$0xf]
      %v410 = vld [vmem:[%s380 + $0x4] sm:$0xf]
      %v427 = vunpack.c.l.b16 %v393
      %v428 = vunpack.c.l.b16 %v394
      %v429 = vunpack.c.l.b16 %v395
      %v430 = vunpack.c.l.b16 %v396
      %v431 = vunpack.c.l.b16 %v397
      %v432 = vunpack.c.l.b16 %v398
      %v433 = vunpack.c.l.b16 %v399
      %v434 = vunpack.c.l.b16 %v400
      %v435 = vunpack.c.l.b16 %v401
      %v436 = vunpack.c.l.b16 %v402
      %v437 = vunpack.c.l.b16 %v403
      %v438 = vunpack.c.l.b16 %v404
      %v439 = vunpack.c.l.b16 %v405
      %v440 = vunpack.c.l.b16 %v406
      %v441 = vunpack.c.l.b16 %v407
      %v442 = vunpack.c.l.b16 %v408
      %v443 = vpack.c.b16 %v428, %v427
      %v444 = vpack.c.b16 %v430, %v429
      %v445 = vpack.c.b16 %v432, %v431
      %v446 = vpack.c.b16 %v434, %v433
      %v447 = vpack.c.b16 %v436, %v435
      %v448 = vpack.c.b16 %v438, %v437
      %v449 = vpack.c.b16 %v440, %v439
      %v450 = vpack.c.b16 %v442, %v441
      %v453 = vunpack.c.l.b16 %v409
      %v454 = vunpack.c.l.b16 %v410
      %v455 = vpack.c.b16 %v454, %v453
      %v456 = vld [vmem:[%s2] sm:$0x3]
      %s457 = scalar_lea.vmem %s2, 2
      %v458 = vld [vmem:[%s457] sm:$0x3]
      %vm459 = vsmask.f32 7424
      %v461 = vshrl.u32 %v443, 16
      %v463 = vshll.u32 %v443, 16
      %v465 = vrot.slane %v463, 1
      %v466 = vor.u32 %v461, %v465
      %v468 = vshll.u32 %v444, 16
      %v470 = vrot.slane %v468, 1
      %v471 = vsel %vm459, %v466, %v470
      %v472 = vshrl.u32 %v444, 16
      %v474 = vor.u32 %v472, %v470
      %v476 = vshll.u32 %v445, 16
      %v478 = vrot.slane %v476, 1
      %v479 = vsel %vm459, %v474, %v478
      %v480 = vshrl.u32 %v445, 16
      %v482 = vor.u32 %v480, %v478
      %v484 = vshll.u32 %v446, 16
      %v486 = vrot.slane %v484, 1
      %v487 = vsel %vm459, %v482, %v486
      %v488 = vshrl.u32 %v446, 16
      %v490 = vor.u32 %v488, %v486
      %v492 = vshll.u32 %v447, 16
      %v494 = vrot.slane %v492, 1
      %v495 = vsel %vm459, %v490, %v494
      %v496 = vshrl.u32 %v447, 16
      %v498 = vor.u32 %v496, %v494
      %v500 = vshll.u32 %v448, 16
      %v502 = vrot.slane %v500, 1
      %v503 = vsel %vm459, %v498, %v502
      %v504 = vshrl.u32 %v448, 16
      %v506 = vor.u32 %v504, %v502
      %v508 = vshll.u32 %v449, 16
      %v510 = vrot.slane %v508, 1
      %v511 = vsel %vm459, %v506, %v510
      %v512 = vshrl.u32 %v449, 16
      %v514 = vor.u32 %v512, %v510
      %v516 = vshll.u32 %v450, 16
      %v518 = vrot.slane %v516, 1
      %v519 = vsel %vm459, %v514, %v518
      %v520 = vshrl.u32 %v450, 16
      %v522 = vor.u32 %v520, %v518
      %v524 = vshll.u32 %v455, 16
      %v526 = vrot.slane %v524, 1
      %v527 = vsel %vm459, %v522, %v526
      %v528 = vshrl.u32 %v455, 16
      %v530 = vor.u32 %v528, %v526
      %vm531 = vcmask 31744
      %v533 = vsel %vm531, %v471, 0
      %v536 = vsel %vm531, %v479, 0
      %v539 = vsel %vm531, %v487, 0
      %v542 = vsel %vm531, %v495, 0
      %v545 = vsel %vm531, %v503, 0
      %v548 = vsel %vm531, %v511, 0
      %v551 = vsel %vm531, %v519, 0
      %v554 = vsel %vm531, %v527, 0
      %v557 = vsel %vm531, %v530, 0
      %vm559 = vcmask 1041408
      %v561 = vsel %vm559, %v458, 0
      %563 = vmatprep.subr.bf16.mxu0 0
      %564 = vmatpush1.bf16.msra.mxu0 0
      %565 = vmatprep.subr.bf16.mxu0 0
      %566 = vmatpush1.bf16.msra.mxu0 0
      %567 = vmatprep.subr.bf16.mxu0 0
      %568 = vmatpush1.bf16.msra.mxu0 0
      %569 = vmatprep.subr.bf16.mxu0 0
      %570 = vmatpush1.bf16.msra.mxu0 0
      %571 = vmatprep.subr.bf16.mxu0 0
      %572 = vmatpush1.bf16.msra.mxu0 0
      %573 = vmatprep.subr.bf16.mxu0 0
      %574 = vmatpush1.bf16.msra.mxu0 0
      %575 = vmatprep.subr.bf16.mxu0 0
      %576 = vmatpush1.bf16.msra.mxu0 0
      %577 = vmatprep.subr.bf16.mxu0 0
      %578 = vmatpush1.bf16.msra.mxu0 %v561
      %579 = vmatprep.subr.bf16.mxu0 0
      %580 = vmatpush2.bf16.msra.mxu0 0
      %581 = vmatprep.subr.bf16.mxu0 0
      %582 = vmatpush2.bf16.msra.mxu0 0
      %583 = vmatprep.subr.bf16.mxu0 0
      %584 = vmatpush2.bf16.msra.mxu0 0
      %585 = vmatprep.subr.bf16.mxu0 0
      %586 = vmatpush2.bf16.msra.mxu0 0
      %587 = vmatprep.subr.bf16.mxu0 0
      %588 = vmatpush2.bf16.msra.mxu0 0
      %589 = vmatprep.subr.bf16.mxu0 0
      %590 = vmatpush2.bf16.msra.mxu0 0
      %591 = vmatprep.subr.bf16.mxu0 0
      %592 = vmatpush2.bf16.msra.mxu0 0
      %593 = vmatprep.subr.bf16.mxu0 0
      %594 = vmatpush2.bf16.msra.mxu0 0
      %595 = vmatprep.mubr.bf16.mxu0 0
      %596 = vmatmul.mubr.bf16.gmra.mxu0 %v533
      %v597 = vpop.f32.mrf.mxu0
      %v598 = vadd.f32 0.0, %v597
      %v599 = vpop.f32.mrf.mxu0
      %v600 = vpop.f32.mrf.mxu0
      %v601 = vadd.f32 0.0, %v600
      %v602 = vpop.f32.mrf.mxu0
      %603 = vmatprep.mubr.bf16.mxu0 0
      %604 = vmatmul.mubr.bf16.gmra.mxu0 %v536
      %v605 = vpop.f32.mrf.mxu0
      %v606 = vadd.f32 0.0, %v605
      %v607 = vpop.f32.mrf.mxu0
      %v608 = vpop.f32.mrf.mxu0
      %v609 = vadd.f32 0.0, %v608
      %v610 = vpop.f32.mrf.mxu0
      %611 = vmatprep.mubr.bf16.mxu0 0
      %612 = vmatmul.mubr.bf16.gmra.mxu0 %v539
      %v613 = vpop.f32.mrf.mxu0
      %v614 = vadd.f32 0.0, %v613
      %v615 = vpop.f32.mrf.mxu0
      %v616 = vpop.f32.mrf.mxu0
      %v617 = vadd.f32 0.0, %v616
      %v618 = vpop.f32.mrf.mxu0
      %619 = vmatprep.mubr.bf16.mxu0 0
      %620 = vmatmul.mubr.bf16.gmra.mxu0 %v542
      %v621 = vpop.f32.mrf.mxu0
      %v622 = vadd.f32 0.0, %v621
      %v623 = vpop.f32.mrf.mxu0
      %v624 = vpop.f32.mrf.mxu0
      %v625 = vadd.f32 0.0, %v624
      %v626 = vpop.f32.mrf.mxu0
      %627 = vmatprep.mubr.bf16.mxu0 0
      %628 = vmatmul.mubr.bf16.gmra.mxu0 %v545
      %v629 = vpop.f32.mrf.mxu0
      %v630 = vadd.f32 0.0, %v629
      %v631 = vpop.f32.mrf.mxu0
      %v632 = vpop.f32.mrf.mxu0
      %v633 = vadd.f32 0.0, %v632
      %v634 = vpop.f32.mrf.mxu0
      %635 = vmatprep.mubr.bf16.mxu0 0
      %636 = vmatmul.mubr.bf16.gmra.mxu0 %v548
      %v637 = vpop.f32.mrf.mxu0
      %v638 = vadd.f32 0.0, %v637
      %v639 = vpop.f32.mrf.mxu0
      %v640 = vpop.f32.mrf.mxu0
      %v641 = vadd.f32 0.0, %v640
      %v642 = vpop.f32.mrf.mxu0
      %643 = vmatprep.mubr.bf16.mxu0 0
      %644 = vmatmul.mubr.bf16.gmra.mxu0 %v551
      %v645 = vpop.f32.mrf.mxu0
      %v646 = vadd.f32 0.0, %v645
      %v647 = vpop.f32.mrf.mxu0
      %v648 = vpop.f32.mrf.mxu0
      %v649 = vadd.f32 0.0, %v648
      %v650 = vpop.f32.mrf.mxu0
      %651 = vmatprep.mubr.bf16.mxu0 0
      %652 = vmatmul.mubr.bf16.gmra.mxu0 %v554
      %v653 = vpop.f32.mrf.mxu0
      %v654 = vadd.f32 0.0, %v653
      %v655 = vpop.f32.mrf.mxu0
      %v656 = vpop.f32.mrf.mxu0
      %v657 = vadd.f32 0.0, %v656
      %v658 = vpop.f32.mrf.mxu0
      %659 = vmatprep.mubr.bf16.mxu0 0
      %660 = vmatmul.mubr.bf16.gmra.mxu0 %v557
      %v661 = vpop.f32.mrf.mxu0
      %v662 = vadd.f32 0.0, %v661
      %v663 = vpop.f32.mrf.mxu0
      %v664 = vpop.f32.mrf.mxu0
      %v665 = vpop.f32.mrf.mxu0
      %666 = vdwg.mxu0
      %v667 = vsel %vm531, %v443, 0
      %v669 = vsel %vm531, %v444, 0
      %v671 = vsel %vm531, %v445, 0
      %v673 = vsel %vm531, %v446, 0
      %v675 = vsel %vm531, %v447, 0
      %v677 = vsel %vm531, %v448, 0
      %v679 = vsel %vm531, %v449, 0
      %v681 = vsel %vm531, %v450, 0
      %v683 = vsel %vm531, %v455, 0
      %v686 = vsel %vm559, %v456, 0
      %688 = vmatprep.subr.bf16.mxu0 0
      %689 = vmatpush1.bf16.msra.mxu0 0
      %690 = vmatprep.subr.bf16.mxu0 0
      %691 = vmatpush1.bf16.msra.mxu0 0
      %692 = vmatprep.subr.bf16.mxu0 0
      %693 = vmatpush1.bf16.msra.mxu0 0
      %694 = vmatprep.subr.bf16.mxu0 0
      %695 = vmatpush1.bf16.msra.mxu0 0
      %696 = vmatprep.subr.bf16.mxu0 0
      %697 = vmatpush1.bf16.msra.mxu0 0
      %698 = vmatprep.subr.bf16.mxu0 0
      %699 = vmatpush1.bf16.msra.mxu0 0
      %700 = vmatprep.subr.bf16.mxu0 0
      %701 = vmatpush1.bf16.msra.mxu0 0
      %702 = vmatprep.subr.bf16.mxu0 0
      %703 = vmatpush1.bf16.msra.mxu0 %v686
      %704 = vmatprep.subr.bf16.mxu0 0
      %705 = vmatpush2.bf16.msra.mxu0 0
      %706 = vmatprep.subr.bf16.mxu0 0
      %707 = vmatpush2.bf16.msra.mxu0 0
      %708 = vmatprep.subr.bf16.mxu0 0
      %709 = vmatpush2.bf16.msra.mxu0 0
      %710 = vmatprep.subr.bf16.mxu0 0
      %711 = vmatpush2.bf16.msra.mxu0 0
      %712 = vmatprep.subr.bf16.mxu0 0
      %713 = vmatpush2.bf16.msra.mxu0 0
      %714 = vmatprep.subr.bf16.mxu0 0
      %715 = vmatpush2.bf16.msra.mxu0 0
      %716 = vmatprep.subr.bf16.mxu0 0
      %717 = vmatpush2.bf16.msra.mxu0 0
      %718 = vmatprep.subr.bf16.mxu0 0
      %719 = vmatpush2.bf16.msra.mxu0 0
      %720 = vmatprep.mubr.bf16.mxu0 0
      %721 = vmatmul.mubr.bf16.gmra.mxu0 %v667
      %v722 = vpop.f32.mrf.mxu0
      %v723 = vadd.f32 %v598, %v722
      %v724 = vpop.f32.mrf.mxu0
      %v725 = vpop.f32.mrf.mxu0
      %v726 = vadd.f32 %v601, %v725
      %v727 = vpop.f32.mrf.mxu0
      %728 = vmatprep.mubr.bf16.mxu0 0
      %729 = vmatmul.mubr.bf16.gmra.mxu0 %v669
      %v730 = vpop.f32.mrf.mxu0
      %v731 = vadd.f32 %v606, %v730
      %v732 = vpop.f32.mrf.mxu0
      %v733 = vpop.f32.mrf.mxu0
      %v734 = vadd.f32 %v609, %v733
      %v735 = vpop.f32.mrf.mxu0
      %736 = vmatprep.mubr.bf16.mxu0 0
      %737 = vmatmul.mubr.bf16.gmra.mxu0 %v671
      %v738 = vpop.f32.mrf.mxu0
      %v739 = vadd.f32 %v614, %v738
      %v740 = vpop.f32.mrf.mxu0
      %v741 = vpop.f32.mrf.mxu0
      %v742 = vadd.f32 %v617, %v741
      %v743 = vpop.f32.mrf.mxu0
      %744 = vmatprep.mubr.bf16.mxu0 0
      %745 = vmatmul.mubr.bf16.gmra.mxu0 %v673
      %v746 = vpop.f32.mrf.mxu0
      %v747 = vadd.f32 %v622, %v746
      %v748 = vpop.f32.mrf.mxu0
      %v749 = vpop.f32.mrf.mxu0
      %v750 = vadd.f32 %v625, %v749
      %v751 = vpop.f32.mrf.mxu0
      %752 = vmatprep.mubr.bf16.mxu0 0
      %753 = vmatmul.mubr.bf16.gmra.mxu0 %v675
      %v754 = vpop.f32.mrf.mxu0
      %v755 = vadd.f32 %v630, %v754
      %v756 = vpop.f32.mrf.mxu0
      %v757 = vpop.f32.mrf.mxu0
      %v758 = vadd.f32 %v633, %v757
      %v759 = vpop.f32.mrf.mxu0
      %760 = vmatprep.mubr.bf16.mxu0 0
      %761 = vmatmul.mubr.bf16.gmra.mxu0 %v677
      %v762 = vpop.f32.mrf.mxu0
      %v763 = vadd.f32 %v638, %v762
      %v764 = vpop.f32.mrf.mxu0
      %v765 = vpop.f32.mrf.mxu0
      %v766 = vadd.f32 %v641, %v765
      %v767 = vpop.f32.mrf.mxu0
      %768 = vmatprep.mubr.bf16.mxu0 0
      %769 = vmatmul.mubr.bf16.gmra.mxu0 %v679
      %v770 = vpop.f32.mrf.mxu0
      %v771 = vadd.f32 %v646, %v770
      %v772 = vpop.f32.mrf.mxu0
      %v773 = vpop.f32.mrf.mxu0
      %v774 = vadd.f32 %v649, %v773
      %v775 = vpop.f32.mrf.mxu0
      %776 = vmatprep.mubr.bf16.mxu0 0
      %777 = vmatmul.mubr.bf16.gmra.mxu0 %v681
      %v778 = vpop.f32.mrf.mxu0
      %v779 = vadd.f32 %v654, %v778
      %v780 = vpop.f32.mrf.mxu0
      %v781 = vpop.f32.mrf.mxu0
      %v782 = vadd.f32 %v657, %v781
      %v783 = vpop.f32.mrf.mxu0
      %784 = vmatprep.mubr.bf16.mxu0 0
      %785 = vmatmul.mubr.bf16.gmra.mxu0 %v683
      %v786 = vpop.f32.mrf.mxu0
      %v787 = vadd.f32 %v662, %v786
      %v788 = vpop.f32.mrf.mxu0
      %v789 = vpop.f32.mrf.mxu0
      %v790 = vpop.f32.mrf.mxu0
      %791 = vdwg.mxu0
      %s792 = scalar_lea.vmem %s2, 4
      %v793 = vld [vmem:[%s792] sm:$0x3]
      %vm794 = vcmask 1046528
      %v795 = vrot.slane %v443, 1
      %v796 = vrot.slane %v444, 1
      %v797 = vsel %vm794, %v795, %v796
      %v798 = vrot.slane %v445, 1
      %v799 = vsel %vm794, %v796, %v798
      %v800 = vrot.slane %v446, 1
      %v801 = vsel %vm794, %v798, %v800
      %v802 = vrot.slane %v447, 1
      %v803 = vsel %vm794, %v800, %v802
      %v804 = vrot.slane %v448, 1
      %v805 = vsel %vm794, %v802, %v804
      %v806 = vrot.slane %v449, 1
      %v807 = vsel %vm794, %v804, %v806
      %v808 = vrot.slane %v450, 1
      %v809 = vsel %vm794, %v806, %v808
      %v810 = vrot.slane %v455, 1
      %v811 = vsel %vm794, %v808, %v810
      %v813 = vsel %vm531, %v797, 0
      %v816 = vsel %vm531, %v799, 0
      %v819 = vsel %vm531, %v801, 0
      %v822 = vsel %vm531, %v803, 0
      %v825 = vsel %vm531, %v805, 0
      %v828 = vsel %vm531, %v807, 0
      %v831 = vsel %vm531, %v809, 0
      %v834 = vsel %vm531, %v811, 0
      %v837 = vsel %vm531, %v810, 0
      %v840 = vsel %vm559, %v793, 0
      %842 = vmatprep.subr.bf16.mxu0 0
      %843 = vmatpush1.bf16.msra.mxu0 0
      %844 = vmatprep.subr.bf16.mxu0 0
      %845 = vmatpush1.bf16.msra.mxu0 0
      %846 = vmatprep.subr.bf16.mxu0 0
      %847 = vmatpush1.bf16.msra.mxu0 0
      %848 = vmatprep.subr.bf16.mxu0 0
      %849 = vmatpush1.bf16.msra.mxu0 0
      %850 = vmatprep.subr.bf16.mxu0 0
      %851 = vmatpush1.bf16.msra.mxu0 0
      %852 = vmatprep.subr.bf16.mxu0 0
      %853 = vmatpush1.bf16.msra.mxu0 0
      %854 = vmatprep.subr.bf16.mxu0 0
      %855 = vmatpush1.bf16.msra.mxu0 0
      %856 = vmatprep.subr.bf16.mxu0 0
      %857 = vmatpush1.bf16.msra.mxu0 %v840
      %858 = vmatprep.subr.bf16.mxu0 0
      %859 = vmatpush2.bf16.msra.mxu0 0
      %860 = vmatprep.subr.bf16.mxu0 0
      %861 = vmatpush2.bf16.msra.mxu0 0
      %862 = vmatprep.subr.bf16.mxu0 0
      %863 = vmatpush2.bf16.msra.mxu0 0
      %864 = vmatprep.subr.bf16.mxu0 0
      %865 = vmatpush2.bf16.msra.mxu0 0
      %866 = vmatprep.subr.bf16.mxu0 0
      %867 = vmatpush2.bf16.msra.mxu0 0
      %868 = vmatprep.subr.bf16.mxu0 0
      %869 = vmatpush2.bf16.msra.mxu0 0
      %870 = vmatprep.subr.bf16.mxu0 0
      %871 = vmatpush2.bf16.msra.mxu0 0
      %872 = vmatprep.subr.bf16.mxu0 0
      %873 = vmatpush2.bf16.msra.mxu0 0
      %874 = vmatprep.mubr.bf16.mxu0 0
      %875 = vmatmul.mubr.bf16.gmra.mxu0 %v813
      %v876 = vpop.f32.mrf.mxu0
      %v877 = vadd.f32 0.0, %v876
      %v878 = vpop.f32.mrf.mxu0
      %v879 = vpop.f32.mrf.mxu0
      %v880 = vadd.f32 0.0, %v879
      %v881 = vpop.f32.mrf.mxu0
      %882 = vmatprep.mubr.bf16.mxu0 0
      %883 = vmatmul.mubr.bf16.gmra.mxu0 %v816
      %v884 = vpop.f32.mrf.mxu0
      %v885 = vadd.f32 0.0, %v884
      %v886 = vpop.f32.mrf.mxu0
      %v887 = vpop.f32.mrf.mxu0
      %v888 = vadd.f32 0.0, %v887
      %v889 = vpop.f32.mrf.mxu0
      %890 = vmatprep.mubr.bf16.mxu0 0
      %891 = vmatmul.mubr.bf16.gmra.mxu0 %v819
      %v892 = vpop.f32.mrf.mxu0
      %v893 = vadd.f32 0.0, %v892
      %v894 = vpop.f32.mrf.mxu0
      %v895 = vpop.f32.mrf.mxu0
      %v896 = vadd.f32 0.0, %v895
      %v897 = vpop.f32.mrf.mxu0
      %898 = vmatprep.mubr.bf16.mxu0 0
      %899 = vmatmul.mubr.bf16.gmra.mxu0 %v822
      %v900 = vpop.f32.mrf.mxu0
      %v901 = vadd.f32 0.0, %v900
      %v902 = vpop.f32.mrf.mxu0
      %v903 = vpop.f32.mrf.mxu0
      %v904 = vadd.f32 0.0, %v903
      %v905 = vpop.f32.mrf.mxu0
      %906 = vmatprep.mubr.bf16.mxu0 0
      %907 = vmatmul.mubr.bf16.gmra.mxu0 %v825
      %v908 = vpop.f32.mrf.mxu0
      %v909 = vadd.f32 0.0, %v908
      %v910 = vpop.f32.mrf.mxu0
      %v911 = vpop.f32.mrf.mxu0
      %v912 = vadd.f32 0.0, %v911
      %v913 = vpop.f32.mrf.mxu0
      %914 = vmatprep.mubr.bf16.mxu0 0
      %915 = vmatmul.mubr.bf16.gmra.mxu0 %v828
      %v916 = vpop.f32.mrf.mxu0
      %v917 = vadd.f32 0.0, %v916
      %v918 = vpop.f32.mrf.mxu0
      %v919 = vpop.f32.mrf.mxu0
      %v920 = vadd.f32 0.0, %v919
      %v921 = vpop.f32.mrf.mxu0
      %922 = vmatprep.mubr.bf16.mxu0 0
      %923 = vmatmul.mubr.bf16.gmra.mxu0 %v831
      %v924 = vpop.f32.mrf.mxu0
      %v925 = vadd.f32 0.0, %v924
      %v926 = vpop.f32.mrf.mxu0
      %v927 = vpop.f32.mrf.mxu0
      %v928 = vadd.f32 0.0, %v927
      %v929 = vpop.f32.mrf.mxu0
      %930 = vmatprep.mubr.bf16.mxu0 0
      %931 = vmatmul.mubr.bf16.gmra.mxu0 %v834
      %v932 = vpop.f32.mrf.mxu0
      %v933 = vadd.f32 0.0, %v932
      %v934 = vpop.f32.mrf.mxu0
      %v935 = vpop.f32.mrf.mxu0
      %v936 = vadd.f32 0.0, %v935
      %v937 = vpop.f32.mrf.mxu0
      %938 = vmatprep.mubr.bf16.mxu0 0
      %939 = vmatmul.mubr.bf16.gmra.mxu0 %v837
      %v940 = vpop.f32.mrf.mxu0
      %v941 = vadd.f32 0.0, %v940
      %v942 = vpop.f32.mrf.mxu0
      %v943 = vpop.f32.mrf.mxu0
      %v944 = vpop.f32.mrf.mxu0
      %945 = vdwg.mxu0
      %v946 = vadd.f32 %v723, %v877
      %v947 = vadd.f32 %v726, %v880
      %v948 = vadd.f32 %v731, %v885
      %v949 = vadd.f32 %v734, %v888
      %v950 = vadd.f32 %v739, %v893
      %v951 = vadd.f32 %v742, %v896
      %v952 = vadd.f32 %v747, %v901
      %v953 = vadd.f32 %v750, %v904
      %v954 = vadd.f32 %v755, %v909
      %v955 = vadd.f32 %v758, %v912
      %v956 = vadd.f32 %v763, %v917
      %v957 = vadd.f32 %v766, %v920
      %v958 = vadd.f32 %v771, %v925
      %v959 = vadd.f32 %v774, %v928
      %v960 = vadd.f32 %v779, %v933
      %v961 = vadd.f32 %v782, %v936
      %v962 = vadd.f32 %v787, %v941
      %s963 = scalar_lea.vmem %s2, 6
      %v964 = vld [vmem:[%s963] sm:$0x3]
      %vm965 = vsmask.f32 6400
      %v966 = vrot.slane %v461, 1
      %v967 = vrot.slane %v463, 2
      %v968 = vor.u32 %v966, %v967
      %v969 = vrot.slane %v472, 1
      %v970 = vrot.slane %v468, 2
      %v971 = vor.u32 %v969, %v970
      %v972 = vsel %vm965, %v968, %v971
      %v973 = vrot.slane %v480, 1
      %v974 = vrot.slane %v476, 2
      %v975 = vor.u32 %v973, %v974
      %v976 = vsel %vm965, %v971, %v975
      %v977 = vrot.slane %v488, 1
      %v978 = vrot.slane %v484, 2
      %v979 = vor.u32 %v977, %v978
      %v980 = vsel %vm965, %v975, %v979
      %v981 = vrot.slane %v496, 1
      %v982 = vrot.slane %v492, 2
      %v983 = vor.u32 %v981, %v982
      %v984 = vsel %vm965, %v979, %v983
      %v985 = vrot.slane %v504, 1
      %v986 = vrot.slane %v500, 2
      %v987 = vor.u32 %v985, %v986
      %v988 = vsel %vm965, %v983, %v987
      %v989 = vrot.slane %v512, 1
      %v990 = vrot.slane %v508, 2
      %v991 = vor.u32 %v989, %v990
      %v992 = vsel %vm965, %v987, %v991
      %v993 = vrot.slane %v520, 1
      %v994 = vrot.slane %v516, 2
      %v995 = vor.u32 %v993, %v994
      %v996 = vsel %vm965, %v991, %v995
      %v997 = vrot.slane %v528, 1
      %v998 = vrot.slane %v524, 2
      %v999 = vor.u32 %v997, %v998
      %v1000 = vsel %vm965, %v995, %v999
      %v1002 = vsel %vm531, %v972, 0
      %v1005 = vsel %vm531, %v976, 0
      %v1008 = vsel %vm531, %v980, 0
      %v1011 = vsel %vm531, %v984, 0
      %v1014 = vsel %vm531, %v988, 0
      %v1017 = vsel %vm531, %v992, 0
      %v1020 = vsel %vm531, %v996, 0
      %v1023 = vsel %vm531, %v1000, 0
      %v1026 = vsel %vm531, %v999, 0
      %v1029 = vsel %vm559, %v964, 0
      %1031 = vmatprep.subr.bf16.mxu0 0
      %1032 = vmatpush1.bf16.msra.mxu0 0
      %1033 = vmatprep.subr.bf16.mxu0 0
      %1034 = vmatpush1.bf16.msra.mxu0 0
      %1035 = vmatprep.subr.bf16.mxu0 0
      %1036 = vmatpush1.bf16.msra.mxu0 0
      %1037 = vmatprep.subr.bf16.mxu0 0
      %1038 = vmatpush1.bf16.msra.mxu0 0
      %1039 = vmatprep.subr.bf16.mxu0 0
      %1040 = vmatpush1.bf16.msra.mxu0 0
      %1041 = vmatprep.subr.bf16.mxu0 0
      %1042 = vmatpush1.bf16.msra.mxu0 0
      %1043 = vmatprep.subr.bf16.mxu0 0
      %1044 = vmatpush1.bf16.msra.mxu0 0
      %1045 = vmatprep.subr.bf16.mxu0 0
      %1046 = vmatpush1.bf16.msra.mxu0 %v1029
      %1047 = vmatprep.subr.bf16.mxu0 0
      %1048 = vmatpush2.bf16.msra.mxu0 0
      %1049 = vmatprep.subr.bf16.mxu0 0
      %1050 = vmatpush2.bf16.msra.mxu0 0
      %1051 = vmatprep.subr.bf16.mxu0 0
      %1052 = vmatpush2.bf16.msra.mxu0 0
      %1053 = vmatprep.subr.bf16.mxu0 0
      %1054 = vmatpush2.bf16.msra.mxu0 0
      %1055 = vmatprep.subr.bf16.mxu0 0
      %1056 = vmatpush2.bf16.msra.mxu0 0
      %1057 = vmatprep.subr.bf16.mxu0 0
      %1058 = vmatpush2.bf16.msra.mxu0 0
      %1059 = vmatprep.subr.bf16.mxu0 0
      %1060 = vmatpush2.bf16.msra.mxu0 0
      %1061 = vmatprep.subr.bf16.mxu0 0
      %1062 = vmatpush2.bf16.msra.mxu0 0
      %1063 = vmatprep.mubr.bf16.mxu0 0
      %1064 = vmatmul.mubr.bf16.gmra.mxu0 %v1002
      %v1065 = vpop.f32.mrf.mxu0
      %v1066 = vadd.f32 0.0, %v1065
      %v1067 = vpop.f32.mrf.mxu0
      %v1068 = vpop.f32.mrf.mxu0
      %v1069 = vadd.f32 0.0, %v1068
      %v1070 = vpop.f32.mrf.mxu0
      %1071 = vmatprep.mubr.bf16.mxu0 0
      %1072 = vmatmul.mubr.bf16.gmra.mxu0 %v1005
      %v1073 = vpop.f32.mrf.mxu0
      %v1074 = vadd.f32 0.0, %v1073
      %v1075 = vpop.f32.mrf.mxu0
      %v1076 = vpop.f32.mrf.mxu0
      %v1077 = vadd.f32 0.0, %v1076
      %v1078 = vpop.f32.mrf.mxu0
      %1079 = vmatprep.mubr.bf16.mxu0 0
      %1080 = vmatmul.mubr.bf16.gmra.mxu0 %v1008
      %v1081 = vpop.f32.mrf.mxu0
      %v1082 = vadd.f32 0.0, %v1081
      %v1083 = vpop.f32.mrf.mxu0
      %v1084 = vpop.f32.mrf.mxu0
      %v1085 = vadd.f32 0.0, %v1084
      %v1086 = vpop.f32.mrf.mxu0
      %1087 = vmatprep.mubr.bf16.mxu0 0
      %1088 = vmatmul.mubr.bf16.gmra.mxu0 %v1011
      %v1089 = vpop.f32.mrf.mxu0
      %v1090 = vadd.f32 0.0, %v1089
      %v1091 = vpop.f32.mrf.mxu0
      %v1092 = vpop.f32.mrf.mxu0
      %v1093 = vadd.f32 0.0, %v1092
      %v1094 = vpop.f32.mrf.mxu0
      %1095 = vmatprep.mubr.bf16.mxu0 0
      %1096 = vmatmul.mubr.bf16.gmra.mxu0 %v1014
      %v1097 = vpop.f32.mrf.mxu0
      %v1098 = vadd.f32 0.0, %v1097
      %v1099 = vpop.f32.mrf.mxu0
      %v1100 = vpop.f32.mrf.mxu0
      %v1101 = vadd.f32 0.0, %v1100
      %v1102 = vpop.f32.mrf.mxu0
      %1103 = vmatprep.mubr.bf16.mxu0 0
      %1104 = vmatmul.mubr.bf16.gmra.mxu0 %v1017
      %v1105 = vpop.f32.mrf.mxu0
      %v1106 = vadd.f32 0.0, %v1105
      %v1107 = vpop.f32.mrf.mxu0
      %v1108 = vpop.f32.mrf.mxu0
      %v1109 = vadd.f32 0.0, %v1108
      %v1110 = vpop.f32.mrf.mxu0
      %1111 = vmatprep.mubr.bf16.mxu0 0
      %1112 = vmatmul.mubr.bf16.gmra.mxu0 %v1020
      %v1113 = vpop.f32.mrf.mxu0
      %v1114 = vadd.f32 0.0, %v1113
      %v1115 = vpop.f32.mrf.mxu0
      %v1116 = vpop.f32.mrf.mxu0
      %v1117 = vadd.f32 0.0, %v1116
      %v1118 = vpop.f32.mrf.mxu0
      %1119 = vmatprep.mubr.bf16.mxu0 0
      %1120 = vmatmul.mubr.bf16.gmra.mxu0 %v1023
      %v1121 = vpop.f32.mrf.mxu0
      %v1122 = vadd.f32 0.0, %v1121
      %v1123 = vpop.f32.mrf.mxu0
      %v1124 = vpop.f32.mrf.mxu0
      %v1125 = vadd.f32 0.0, %v1124
      %v1126 = vpop.f32.mrf.mxu0
      %1127 = vmatprep.mubr.bf16.mxu0 0
      %1128 = vmatmul.mubr.bf16.gmra.mxu0 %v1026
      %v1129 = vpop.f32.mrf.mxu0
      %v1130 = vadd.f32 0.0, %v1129
      %v1131 = vpop.f32.mrf.mxu0
      %v1132 = vpop.f32.mrf.mxu0
      %v1133 = vpop.f32.mrf.mxu0
      %1134 = vdwg.mxu0
      %v1135 = vadd.f32 %v946, %v1066
      %v1136 = vadd.f32 %v947, %v1069
      %v1137 = vadd.f32 %v948, %v1074
      %v1138 = vadd.f32 %v949, %v1077
      %v1139 = vadd.f32 %v950, %v1082
      %v1140 = vadd.f32 %v951, %v1085
      %v1141 = vadd.f32 %v952, %v1090
      %v1142 = vadd.f32 %v953, %v1093
      %v1143 = vadd.f32 %v954, %v1098
      %v1144 = vadd.f32 %v955, %v1101
      %v1145 = vadd.f32 %v956, %v1106
      %v1146 = vadd.f32 %v957, %v1109
      %v1147 = vadd.f32 %v958, %v1114
      %v1148 = vadd.f32 %v959, %v1117
      %v1149 = vadd.f32 %v960, %v1122
      %v1150 = vadd.f32 %v961, %v1125
      %v1151 = vadd.f32 %v962, %v1130
      %v1152 = vld [vmem:[%s3] sm:$0x1]
      %v1154 = vlaneseq
      %v1155 = vshrl.u32 %v1154, 7
      %v1156 = vsub.s32 0, %v1155
      %v1157 = vrot.slane %v1152, %v1156
      %v1159 = vadd.f32 %v1135, %v1157
      %v1160 = vadd.f32 %v1136, %v1157
      %v1161 = vadd.f32 %v1137, %v1157
      %v1162 = vadd.f32 %v1138, %v1157
      %v1163 = vadd.f32 %v1139, %v1157
      %v1164 = vadd.f32 %v1140, %v1157
      %v1165 = vadd.f32 %v1141, %v1157
      %v1166 = vadd.f32 %v1142, %v1157
      %v1167 = vadd.f32 %v1143, %v1157
      %v1168 = vadd.f32 %v1144, %v1157
      %v1169 = vadd.f32 %v1145, %v1157
      %v1170 = vadd.f32 %v1146, %v1157
      %v1171 = vadd.f32 %v1147, %v1157
      %v1172 = vadd.f32 %v1148, %v1157
      %v1173 = vadd.f32 %v1149, %v1157
      %v1174 = vadd.f32 %v1150, %v1157
      %v1175 = vadd.f32 %v1151, %v1157
      %v1176 = vmax.f32 %v1159, 0.0
      %v1177 = vmax.f32 %v1160, 0.0
      %v1178 = vmax.f32 %v1161, 0.0
      %v1179 = vmax.f32 %v1162, 0.0
      %v1180 = vmax.f32 %v1163, 0.0
      %v1181 = vmax.f32 %v1164, 0.0
      %v1182 = vmax.f32 %v1165, 0.0
      %v1183 = vmax.f32 %v1166, 0.0
      %v1184 = vmax.f32 %v1167, 0.0
      %v1185 = vmax.f32 %v1168, 0.0
      %v1186 = vmax.f32 %v1169, 0.0
      %v1187 = vmax.f32 %v1170, 0.0
      %v1188 = vmax.f32 %v1171, 0.0
      %v1189 = vmax.f32 %v1172, 0.0
      %v1190 = vmax.f32 %v1173, 0.0
      %v1191 = vmax.f32 %v1174, 0.0
      %v1192 = vmax.f32 %v1175, 0.0
      %s1193 = smul.u32 %s24, 128
      %v1194 = vlaneseq
      %v1195 = vshrl.u32 %v1194, 7
      %v1196 = vadd.s32 %v1195, 8
      %v1197 = vadd.s32 %v1195, 16
      %v1198 = vadd.s32 %v1195, 24
      %v1199 = vadd.s32 %v1195, 32
      %v1200 = vadd.s32 %v1195, 40
      %v1201 = vadd.s32 %v1195, 48
      %v1202 = vadd.s32 %v1195, 56
      %v1203 = vadd.s32 %v1195, 64
      %v1204 = vadd.s32 %v1195, 72
      %v1205 = vadd.s32 %v1195, 80
      %v1206 = vadd.s32 %v1195, 88
      %v1207 = vadd.s32 %v1195, 96
      %v1208 = vadd.s32 %v1195, 104
      %v1209 = vadd.s32 %v1195, 112
      %v1210 = vadd.s32 %v1195, 120
      %v1211 = vadd.s32 %v1195, 128
      %s1212 = ssub.s32 2, %s1193
      %v1213 = vstv %s1212
      %vm1214 = vcmp.ge.s32.totalorder %v1195, %v1213
      %vm1215 = vcmp.ge.s32.totalorder %v1196, %v1213
      %vm1216 = vcmp.ge.s32.totalorder %v1197, %v1213
      %vm1217 = vcmp.ge.s32.totalorder %v1198, %v1213
      %vm1218 = vcmp.ge.s32.totalorder %v1199, %v1213
      %vm1219 = vcmp.ge.s32.totalorder %v1200, %v1213
      %vm1220 = vcmp.ge.s32.totalorder %v1201, %v1213
      %vm1221 = vcmp.ge.s32.totalorder %v1202, %v1213
      %vm1222 = vcmp.ge.s32.totalorder %v1203, %v1213
      %vm1223 = vcmp.ge.s32.totalorder %v1204, %v1213
      %vm1224 = vcmp.ge.s32.totalorder %v1205, %v1213
      %vm1225 = vcmp.ge.s32.totalorder %v1206, %v1213
      %vm1226 = vcmp.ge.s32.totalorder %v1207, %v1213
      %vm1227 = vcmp.ge.s32.totalorder %v1208, %v1213
      %vm1228 = vcmp.ge.s32.totalorder %v1209, %v1213
      %vm1229 = vcmp.ge.s32.totalorder %v1210, %v1213
      %vm1230 = vcmp.ge.s32.totalorder %v1211, %v1213
      %v1231 = vsel %vm1214, 1, 0
      %v1232 = vsel %vm1215, 1, 0
      %v1233 = vsel %vm1216, 1, 0
      %v1234 = vsel %vm1217, 1, 0
      %v1235 = vsel %vm1218, 1, 0
      %v1236 = vsel %vm1219, 1, 0
      %v1237 = vsel %vm1220, 1, 0
      %v1238 = vsel %vm1221, 1, 0
      %v1239 = vsel %vm1222, 1, 0
      %v1240 = vsel %vm1223, 1, 0
      %v1241 = vsel %vm1224, 1, 0
      %v1242 = vsel %vm1225, 1, 0
      %v1243 = vsel %vm1226, 1, 0
      %v1244 = vsel %vm1227, 1, 0
      %v1245 = vsel %vm1228, 1, 0
      %v1246 = vsel %vm1229, 1, 0
      %v1247 = vsel %vm1230, 1, 0
      %vm1248 = vcmp.eq.s32.totalorder %v1231, 1
      %vm1249 = vcmp.eq.s32.totalorder %v1232, 1
      %vm1250 = vcmp.eq.s32.totalorder %v1233, 1
      %vm1251 = vcmp.eq.s32.totalorder %v1234, 1
      %vm1252 = vcmp.eq.s32.totalorder %v1235, 1
      %vm1253 = vcmp.eq.s32.totalorder %v1236, 1
      %vm1254 = vcmp.eq.s32.totalorder %v1237, 1
      %vm1255 = vcmp.eq.s32.totalorder %v1238, 1
      %vm1256 = vcmp.eq.s32.totalorder %v1239, 1
      %vm1257 = vcmp.eq.s32.totalorder %v1240, 1
      %vm1258 = vcmp.eq.s32.totalorder %v1241, 1
      %vm1259 = vcmp.eq.s32.totalorder %v1242, 1
      %vm1260 = vcmp.eq.s32.totalorder %v1243, 1
      %vm1261 = vcmp.eq.s32.totalorder %v1244, 1
      %vm1262 = vcmp.eq.s32.totalorder %v1245, 1
      %vm1263 = vcmp.eq.s32.totalorder %v1246, 1
      %vm1264 = vcmp.eq.s32.totalorder %v1247, 1
      %v1265 = vsel %vm1248, %v1176, 0.0
      %v1266 = vsel %vm1249, %v1177, 0.0
      %v1267 = vsel %vm1250, %v1178, 0.0
      %v1268 = vsel %vm1251, %v1179, 0.0
      %v1269 = vsel %vm1252, %v1180, 0.0
      %v1270 = vsel %vm1253, %v1181, 0.0
      %v1271 = vsel %vm1254, %v1182, 0.0
      %v1272 = vsel %vm1255, %v1183, 0.0
      %v1273 = vsel %vm1256, %v1184, 0.0
      %v1274 = vsel %vm1257, %v1185, 0.0
      %v1275 = vsel %vm1258, %v1186, 0.0
      %v1276 = vsel %vm1259, %v1187, 0.0
      %v1277 = vsel %vm1260, %v1188, 0.0
      %v1278 = vsel %vm1261, %v1189, 0.0
      %v1279 = vsel %vm1262, %v1190, 0.0
      %v1280 = vsel %vm1263, %v1191, 0.0
      %v1281 = vsel %vm1264, %v1192, 0.0
      %v1282 = vpack.c.bf16 %v1266, %v1265
      %v1283 = vpack.c.bf16 %v1268, %v1267
      %v1284 = vpack.c.bf16 %v1270, %v1269
      %v1285 = vpack.c.bf16 %v1272, %v1271
      %v1286 = vpack.c.bf16 %v1274, %v1273
      %v1287 = vpack.c.bf16 %v1276, %v1275
      %v1288 = vpack.c.bf16 %v1278, %v1277
      %v1289 = vpack.c.bf16 %v1280, %v1279
      %v1290 = vpack.c.bf16 %v1281, %v1281
      %v1291 = vld [vmem:[%s4] sm:$0xf]
      %v1292 = vld [vmem:[%s4 + $0x4] sm:$0xf]
      %v1293 = vld [vmem:[%s4 + $0x8] sm:$0xf]
      %v1294 = vld [vmem:[%s4 + $0xc] sm:$0xf]
      %v1295 = vld [vmem:[%s4 + $0x10] sm:$0xf]
      %v1296 = vld [vmem:[%s4 + $0x14] sm:$0xf]
      %v1297 = vld [vmem:[%s4 + $0x18] sm:$0xf]
      %v1298 = vld [vmem:[%s4 + $0x1c] sm:$0xf]
      %v1299 = vld [vmem:[%s4 + $0x20] sm:$0xf]
      %v1300 = vld [vmem:[%s4 + $0x24] sm:$0xf]
      %v1301 = vld [vmem:[%s4 + $0x28] sm:$0xf]
      %v1302 = vld [vmem:[%s4 + $0x2c] sm:$0xf]
      %v1303 = vld [vmem:[%s4 + $0x30] sm:$0xf]
      %v1304 = vld [vmem:[%s4 + $0x34] sm:$0xf]
      %v1305 = vld [vmem:[%s4 + $0x38] sm:$0xf]
      %v1306 = vld [vmem:[%s4 + $0x3c] sm:$0xf]
      %s1307 = scalar_lea.vmem %s4, 64
      %v1308 = vld [vmem:[%s1307] sm:$0xf]
      %v1309 = vld [vmem:[%s1307 + $0x4] sm:$0xf]
      %v1310 = vld [vmem:[%s1307 + $0x8] sm:$0xf]
      %v1311 = vld [vmem:[%s1307 + $0xc] sm:$0xf]
      %v1312 = vld [vmem:[%s1307 + $0x10] sm:$0xf]
      %v1313 = vld [vmem:[%s1307 + $0x14] sm:$0xf]
      %v1314 = vld [vmem:[%s1307 + $0x18] sm:$0xf]
      %v1315 = vld [vmem:[%s1307 + $0x1c] sm:$0xf]
      %v1316 = vld [vmem:[%s1307 + $0x20] sm:$0xf]
      %v1317 = vld [vmem:[%s1307 + $0x24] sm:$0xf]
      %v1318 = vld [vmem:[%s1307 + $0x28] sm:$0xf]
      %v1319 = vld [vmem:[%s1307 + $0x2c] sm:$0xf]
      %v1320 = vld [vmem:[%s1307 + $0x30] sm:$0xf]
      %v1321 = vld [vmem:[%s1307 + $0x34] sm:$0xf]
      %v1322 = vld [vmem:[%s1307 + $0x38] sm:$0xf]
      %v1323 = vld [vmem:[%s1307 + $0x3c] sm:$0xf]
      %v1333 = vrot.slane %v1282, 1
      %v1334 = vrot.slane %v1283, 1
      %v1335 = vsel %vm794, %v1333, %v1334
      %v1336 = vrot.slane %v1284, 1
      %v1337 = vsel %vm794, %v1334, %v1336
      %v1338 = vrot.slane %v1285, 1
      %v1339 = vsel %vm794, %v1336, %v1338
      %v1340 = vrot.slane %v1286, 1
      %v1341 = vsel %vm794, %v1338, %v1340
      %v1342 = vrot.slane %v1287, 1
      %v1343 = vsel %vm794, %v1340, %v1342
      %v1344 = vrot.slane %v1288, 1
      %v1345 = vsel %vm794, %v1342, %v1344
      %v1346 = vrot.slane %v1289, 1
      %v1347 = vsel %vm794, %v1344, %v1346
      %v1348 = vrot.slane %v1290, 1
      %v1349 = vsel %vm794, %v1346, %v1348
      %v1374 = vunpack.c.l.b16 %v1308
      %v1375 = vunpack.c.l.b16 %v1309
      %v1376 = vunpack.c.l.b16 %v1310
      %v1377 = vunpack.c.l.b16 %v1311
      %v1378 = vunpack.c.l.b16 %v1312
      %v1379 = vunpack.c.l.b16 %v1313
      %v1380 = vunpack.c.l.b16 %v1314
      %v1381 = vunpack.c.l.b16 %v1315
      %v1382 = vunpack.c.l.b16 %v1316
      %v1383 = vunpack.c.l.b16 %v1317
      %v1384 = vunpack.c.l.b16 %v1318
      %v1385 = vunpack.c.l.b16 %v1319
      %v1386 = vunpack.c.l.b16 %v1320
      %v1387 = vunpack.c.l.b16 %v1321
      %v1388 = vunpack.c.l.b16 %v1322
      %v1389 = vunpack.c.l.b16 %v1323
      %v1390 = vpack.c.b16 %v1375, %v1374
      %v1391 = vpack.c.b16 %v1377, %v1376
      %v1392 = vpack.c.b16 %v1379, %v1378
      %v1393 = vpack.c.b16 %v1381, %v1380
      %v1394 = vpack.c.b16 %v1383, %v1382
      %v1395 = vpack.c.b16 %v1385, %v1384
      %v1396 = vpack.c.b16 %v1387, %v1386
      %v1397 = vpack.c.b16 %v1389, %v1388
      %1406 = vmatprep.subr.bf16.mxu0 0
      %1407 = vmatpush1.bf16.msra.mxu0 %v1397
      %1408 = vmatprep.subr.bf16.mxu0 0
      %1409 = vmatpush1.bf16.msra.mxu0 %v1396
      %1410 = vmatprep.subr.bf16.mxu0 0
      %1411 = vmatpush1.bf16.msra.mxu0 %v1395
      %1412 = vmatprep.subr.bf16.mxu0 0
      %1413 = vmatpush1.bf16.msra.mxu0 %v1394
      %1414 = vmatprep.subr.bf16.mxu0 0
      %1415 = vmatpush1.bf16.msra.mxu0 %v1393
      %1416 = vmatprep.subr.bf16.mxu0 0
      %1417 = vmatpush1.bf16.msra.mxu0 %v1392
      %1418 = vmatprep.subr.bf16.mxu0 0
      %1419 = vmatpush1.bf16.msra.mxu0 %v1391
      %1420 = vmatprep.subr.bf16.mxu0 0
      %1421 = vmatpush1.bf16.msra.mxu0 %v1390
      %1422 = vmatprep.subr.bf16.mxu0 0
      %1423 = vmatpush2.bf16.msra.mxu0 0
      %1424 = vmatprep.subr.bf16.mxu0 0
      %1425 = vmatpush2.bf16.msra.mxu0 0
      %1426 = vmatprep.subr.bf16.mxu0 0
      %1427 = vmatpush2.bf16.msra.mxu0 0
      %1428 = vmatprep.subr.bf16.mxu0 0
      %1429 = vmatpush2.bf16.msra.mxu0 0
      %1430 = vmatprep.subr.bf16.mxu0 0
      %1431 = vmatpush2.bf16.msra.mxu0 0
      %1432 = vmatprep.subr.bf16.mxu0 0
      %1433 = vmatpush2.bf16.msra.mxu0 0
      %1434 = vmatprep.subr.bf16.mxu0 0
      %1435 = vmatpush2.bf16.msra.mxu0 0
      %1436 = vmatprep.subr.bf16.mxu0 0
      %1437 = vmatpush2.bf16.msra.mxu0 0
      %1438 = vmatprep.mubr.bf16.mxu0 0
      %1439 = vmatmul.mubr.bf16.gmra.mxu0 %v1335
      %v1440 = vpop.f32.mrf.mxu0
      %v1441 = vadd.f32 0.0, %v1440
      %v1442 = vpop.f32.mrf.mxu0
      %v1443 = vpop.f32.mrf.mxu0
      %v1444 = vadd.f32 0.0, %v1443
      %v1445 = vpop.f32.mrf.mxu0
      %1446 = vmatprep.mubr.bf16.mxu0 0
      %1447 = vmatmul.mubr.bf16.gmra.mxu0 %v1337
      %v1448 = vpop.f32.mrf.mxu0
      %v1449 = vadd.f32 0.0, %v1448
      %v1450 = vpop.f32.mrf.mxu0
      %v1451 = vpop.f32.mrf.mxu0
      %v1452 = vadd.f32 0.0, %v1451
      %v1453 = vpop.f32.mrf.mxu0
      %1454 = vmatprep.mubr.bf16.mxu0 0
      %1455 = vmatmul.mubr.bf16.gmra.mxu0 %v1339
      %v1456 = vpop.f32.mrf.mxu0
      %v1457 = vadd.f32 0.0, %v1456
      %v1458 = vpop.f32.mrf.mxu0
      %v1459 = vpop.f32.mrf.mxu0
      %v1460 = vadd.f32 0.0, %v1459
      %v1461 = vpop.f32.mrf.mxu0
      %1462 = vmatprep.mubr.bf16.mxu0 0
      %1463 = vmatmul.mubr.bf16.gmra.mxu0 %v1341
      %v1464 = vpop.f32.mrf.mxu0
      %v1465 = vadd.f32 0.0, %v1464
      %v1466 = vpop.f32.mrf.mxu0
      %v1467 = vpop.f32.mrf.mxu0
      %v1468 = vadd.f32 0.0, %v1467
      %v1469 = vpop.f32.mrf.mxu0
      %1470 = vmatprep.mubr.bf16.mxu0 0
      %1471 = vmatmul.mubr.bf16.gmra.mxu0 %v1343
      %v1472 = vpop.f32.mrf.mxu0
      %v1473 = vadd.f32 0.0, %v1472
      %v1474 = vpop.f32.mrf.mxu0
      %v1475 = vpop.f32.mrf.mxu0
      %v1476 = vadd.f32 0.0, %v1475
      %v1477 = vpop.f32.mrf.mxu0
      %1478 = vmatprep.mubr.bf16.mxu0 0
      %1479 = vmatmul.mubr.bf16.gmra.mxu0 %v1345
      %v1480 = vpop.f32.mrf.mxu0
      %v1481 = vadd.f32 0.0, %v1480
      %v1482 = vpop.f32.mrf.mxu0
      %v1483 = vpop.f32.mrf.mxu0
      %v1484 = vadd.f32 0.0, %v1483
      %v1485 = vpop.f32.mrf.mxu0
      %1486 = vmatprep.mubr.bf16.mxu0 0
      %1487 = vmatmul.mubr.bf16.gmra.mxu0 %v1347
      %v1488 = vpop.f32.mrf.mxu0
      %v1489 = vadd.f32 0.0, %v1488
      %v1490 = vpop.f32.mrf.mxu0
      %v1491 = vpop.f32.mrf.mxu0
      %v1492 = vadd.f32 0.0, %v1491
      %v1493 = vpop.f32.mrf.mxu0
      %1494 = vmatprep.mubr.bf16.mxu0 0
      %1495 = vmatmul.mubr.bf16.gmra.mxu0 %v1349
      %v1496 = vpop.f32.mrf.mxu0
      %v1497 = vadd.f32 0.0, %v1496
      %v1498 = vpop.f32.mrf.mxu0
      %v1499 = vpop.f32.mrf.mxu0
      %v1500 = vadd.f32 0.0, %v1499
      %v1501 = vpop.f32.mrf.mxu0
      %1502 = vdwg.mxu0
      %v1519 = vunpack.c.l.b16 %v1291
      %v1520 = vunpack.c.l.b16 %v1292
      %v1521 = vunpack.c.l.b16 %v1293
      %v1522 = vunpack.c.l.b16 %v1294
      %v1523 = vunpack.c.l.b16 %v1295
      %v1524 = vunpack.c.l.b16 %v1296
      %v1525 = vunpack.c.l.b16 %v1297
      %v1526 = vunpack.c.l.b16 %v1298
      %v1527 = vunpack.c.l.b16 %v1299
      %v1528 = vunpack.c.l.b16 %v1300
      %v1529 = vunpack.c.l.b16 %v1301
      %v1530 = vunpack.c.l.b16 %v1302
      %v1531 = vunpack.c.l.b16 %v1303
      %v1532 = vunpack.c.l.b16 %v1304
      %v1533 = vunpack.c.l.b16 %v1305
      %v1534 = vunpack.c.l.b16 %v1306
      %v1535 = vpack.c.b16 %v1520, %v1519
      %v1536 = vpack.c.b16 %v1522, %v1521
      %v1537 = vpack.c.b16 %v1524, %v1523
      %v1538 = vpack.c.b16 %v1526, %v1525
      %v1539 = vpack.c.b16 %v1528, %v1527
      %v1540 = vpack.c.b16 %v1530, %v1529
      %v1541 = vpack.c.b16 %v1532, %v1531
      %v1542 = vpack.c.b16 %v1534, %v1533
      %1551 = vmatprep.subr.bf16.mxu0 0
      %1552 = vmatpush1.bf16.msra.mxu0 %v1542
      %1553 = vmatprep.subr.bf16.mxu0 0
      %1554 = vmatpush1.bf16.msra.mxu0 %v1541
      %1555 = vmatprep.subr.bf16.mxu0 0
      %1556 = vmatpush1.bf16.msra.mxu0 %v1540
      %1557 = vmatprep.subr.bf16.mxu0 0
      %1558 = vmatpush1.bf16.msra.mxu0 %v1539
      %1559 = vmatprep.subr.bf16.mxu0 0
      %1560 = vmatpush1.bf16.msra.mxu0 %v1538
      %1561 = vmatprep.subr.bf16.mxu0 0
      %1562 = vmatpush1.bf16.msra.mxu0 %v1537
      %1563 = vmatprep.subr.bf16.mxu0 0
      %1564 = vmatpush1.bf16.msra.mxu0 %v1536
      %1565 = vmatprep.subr.bf16.mxu0 0
      %1566 = vmatpush1.bf16.msra.mxu0 %v1535
      %1567 = vmatprep.subr.bf16.mxu0 0
      %1568 = vmatpush2.bf16.msra.mxu0 0
      %1569 = vmatprep.subr.bf16.mxu0 0
      %1570 = vmatpush2.bf16.msra.mxu0 0
      %1571 = vmatprep.subr.bf16.mxu0 0
      %1572 = vmatpush2.bf16.msra.mxu0 0
      %1573 = vmatprep.subr.bf16.mxu0 0
      %1574 = vmatpush2.bf16.msra.mxu0 0
      %1575 = vmatprep.subr.bf16.mxu0 0
      %1576 = vmatpush2.bf16.msra.mxu0 0
      %1577 = vmatprep.subr.bf16.mxu0 0
      %1578 = vmatpush2.bf16.msra.mxu0 0
      %1579 = vmatprep.subr.bf16.mxu0 0
      %1580 = vmatpush2.bf16.msra.mxu0 0
      %1581 = vmatprep.subr.bf16.mxu0 0
      %1582 = vmatpush2.bf16.msra.mxu0 0
      %1583 = vmatprep.mubr.bf16.mxu0 0
      %1584 = vmatmul.mubr.bf16.gmra.mxu0 %v1282
      %v1585 = vpop.f32.mrf.mxu0
      %v1586 = vadd.f32 %v1441, %v1585
      %v1587 = vpop.f32.mrf.mxu0
      %v1588 = vpop.f32.mrf.mxu0
      %v1589 = vadd.f32 %v1444, %v1588
      %v1590 = vpop.f32.mrf.mxu0
      %1591 = vmatprep.mubr.bf16.mxu0 0
      %1592 = vmatmul.mubr.bf16.gmra.mxu0 %v1283
      %v1593 = vpop.f32.mrf.mxu0
      %v1594 = vadd.f32 %v1449, %v1593
      %v1595 = vpop.f32.mrf.mxu0
      %v1596 = vpop.f32.mrf.mxu0
      %v1597 = vadd.f32 %v1452, %v1596
      %v1598 = vpop.f32.mrf.mxu0
      %1599 = vmatprep.mubr.bf16.mxu0 0
      %1600 = vmatmul.mubr.bf16.gmra.mxu0 %v1284
      %v1601 = vpop.f32.mrf.mxu0
      %v1602 = vadd.f32 %v1457, %v1601
      %v1603 = vpop.f32.mrf.mxu0
      %v1604 = vpop.f32.mrf.mxu0
      %v1605 = vadd.f32 %v1460, %v1604
      %v1606 = vpop.f32.mrf.mxu0
      %1607 = vmatprep.mubr.bf16.mxu0 0
      %1608 = vmatmul.mubr.bf16.gmra.mxu0 %v1285
      %v1609 = vpop.f32.mrf.mxu0
      %v1610 = vadd.f32 %v1465, %v1609
      %v1611 = vpop.f32.mrf.mxu0
      %v1612 = vpop.f32.mrf.mxu0
      %v1613 = vadd.f32 %v1468, %v1612
      %v1614 = vpop.f32.mrf.mxu0
      %1615 = vmatprep.mubr.bf16.mxu0 0
      %1616 = vmatmul.mubr.bf16.gmra.mxu0 %v1286
      %v1617 = vpop.f32.mrf.mxu0
      %v1618 = vadd.f32 %v1473, %v1617
      %v1619 = vpop.f32.mrf.mxu0
      %v1620 = vpop.f32.mrf.mxu0
      %v1621 = vadd.f32 %v1476, %v1620
      %v1622 = vpop.f32.mrf.mxu0
      %1623 = vmatprep.mubr.bf16.mxu0 0
      %1624 = vmatmul.mubr.bf16.gmra.mxu0 %v1287
      %v1625 = vpop.f32.mrf.mxu0
      %v1626 = vadd.f32 %v1481, %v1625
      %v1627 = vpop.f32.mrf.mxu0
      %v1628 = vpop.f32.mrf.mxu0
      %v1629 = vadd.f32 %v1484, %v1628
      %v1630 = vpop.f32.mrf.mxu0
      %1631 = vmatprep.mubr.bf16.mxu0 0
      %1632 = vmatmul.mubr.bf16.gmra.mxu0 %v1288
      %v1633 = vpop.f32.mrf.mxu0
      %v1634 = vadd.f32 %v1489, %v1633
      %v1635 = vpop.f32.mrf.mxu0
      %v1636 = vpop.f32.mrf.mxu0
      %v1637 = vadd.f32 %v1492, %v1636
      %v1638 = vpop.f32.mrf.mxu0
      %1639 = vmatprep.mubr.bf16.mxu0 0
      %1640 = vmatmul.mubr.bf16.gmra.mxu0 %v1289
      %v1641 = vpop.f32.mrf.mxu0
      %v1642 = vadd.f32 %v1497, %v1641
      %v1643 = vpop.f32.mrf.mxu0
      %v1644 = vpop.f32.mrf.mxu0
      %v1645 = vadd.f32 %v1500, %v1644
      %v1646 = vpop.f32.mrf.mxu0
      %1647 = vdwg.mxu0
      %v1648 = vld [vmem:[%s5] sm:$0x1]
      %v1650 = vlaneseq
      %v1651 = vshrl.u32 %v1650, 7
      %v1652 = vsub.s32 0, %v1651
      %v1653 = vrot.slane %v1648, %v1652
      %v1655 = vadd.f32 %v1586, %v1653
      %v1656 = vadd.f32 %v1589, %v1653
      %v1657 = vadd.f32 %v1594, %v1653
      %v1658 = vadd.f32 %v1597, %v1653
      %v1659 = vadd.f32 %v1602, %v1653
      %v1660 = vadd.f32 %v1605, %v1653
      %v1661 = vadd.f32 %v1610, %v1653
      %v1662 = vadd.f32 %v1613, %v1653
      %v1663 = vadd.f32 %v1618, %v1653
      %v1664 = vadd.f32 %v1621, %v1653
      %v1665 = vadd.f32 %v1626, %v1653
      %v1666 = vadd.f32 %v1629, %v1653
      %v1667 = vadd.f32 %v1634, %v1653
      %v1668 = vadd.f32 %v1637, %v1653
      %v1669 = vadd.f32 %v1642, %v1653
      %v1670 = vadd.f32 %v1645, %v1653
      %v1671 = vmax.f32 %v1655, 0.0
      %v1672 = vmax.f32 %v1656, 0.0
      %v1673 = vmax.f32 %v1657, 0.0
      %v1674 = vmax.f32 %v1658, 0.0
      %v1675 = vmax.f32 %v1659, 0.0
      %v1676 = vmax.f32 %v1660, 0.0
      %v1677 = vmax.f32 %v1661, 0.0
      %v1678 = vmax.f32 %v1662, 0.0
      %v1679 = vmax.f32 %v1663, 0.0
      %v1680 = vmax.f32 %v1664, 0.0
      %v1681 = vmax.f32 %v1665, 0.0
      %v1682 = vmax.f32 %v1666, 0.0
      %v1683 = vmax.f32 %v1667, 0.0
      %v1684 = vmax.f32 %v1668, 0.0
      %v1685 = vmax.f32 %v1669, 0.0
      %v1686 = vmax.f32 %v1670, 0.0
      %v1687 = vld [vmem:[%s6] sm:$0x3]
      %vm1688 = vcmask 1045504
      %v1689 = vrot.slane %v443, 2
      %v1690 = vrot.slane %v444, 2
      %v1691 = vsel %vm1688, %v1689, %v1690
      %v1692 = vrot.slane %v445, 2
      %v1693 = vsel %vm1688, %v1690, %v1692
      %v1694 = vrot.slane %v446, 2
      %v1695 = vsel %vm1688, %v1692, %v1694
      %v1696 = vrot.slane %v447, 2
      %v1697 = vsel %vm1688, %v1694, %v1696
      %v1698 = vrot.slane %v448, 2
      %v1699 = vsel %vm1688, %v1696, %v1698
      %v1700 = vrot.slane %v449, 2
      %v1701 = vsel %vm1688, %v1698, %v1700
      %v1702 = vrot.slane %v450, 2
      %v1703 = vsel %vm1688, %v1700, %v1702
      %v1704 = vrot.slane %v455, 2
      %v1705 = vsel %vm1688, %v1702, %v1704
      %v1707 = vsel %vm531, %v1691, 0
      %v1710 = vsel %vm531, %v1693, 0
      %v1713 = vsel %vm531, %v1695, 0
      %v1716 = vsel %vm531, %v1697, 0
      %v1719 = vsel %vm531, %v1699, 0
      %v1722 = vsel %vm531, %v1701, 0
      %v1725 = vsel %vm531, %v1703, 0
      %v1728 = vsel %vm531, %v1705, 0
      %v1731 = vsel %vm559, %v1687, 0
      %1733 = vmatprep.subr.bf16.mxu0 0
      %1734 = vmatpush1.bf16.msra.mxu0 0
      %1735 = vmatprep.subr.bf16.mxu0 0
      %1736 = vmatpush1.bf16.msra.mxu0 0
      %1737 = vmatprep.subr.bf16.mxu0 0
      %1738 = vmatpush1.bf16.msra.mxu0 0
      %1739 = vmatprep.subr.bf16.mxu0 0
      %1740 = vmatpush1.bf16.msra.mxu0 0
      %1741 = vmatprep.subr.bf16.mxu0 0
      %1742 = vmatpush1.bf16.msra.mxu0 0
      %1743 = vmatprep.subr.bf16.mxu0 0
      %1744 = vmatpush1.bf16.msra.mxu0 0
      %1745 = vmatprep.subr.bf16.mxu0 0
      %1746 = vmatpush1.bf16.msra.mxu0 0
      %1747 = vmatprep.subr.bf16.mxu0 0
      %1748 = vmatpush1.bf16.msra.mxu0 %v1731
      %1749 = vmatprep.subr.bf16.mxu0 0
      %1750 = vmatpush2.bf16.msra.mxu0 0
      %1751 = vmatprep.subr.bf16.mxu0 0
      %1752 = vmatpush2.bf16.msra.mxu0 0
      %1753 = vmatprep.subr.bf16.mxu0 0
      %1754 = vmatpush2.bf16.msra.mxu0 0
      %1755 = vmatprep.subr.bf16.mxu0 0
      %1756 = vmatpush2.bf16.msra.mxu0 0
      %1757 = vmatprep.subr.bf16.mxu0 0
      %1758 = vmatpush2.bf16.msra.mxu0 0
      %1759 = vmatprep.subr.bf16.mxu0 0
      %1760 = vmatpush2.bf16.msra.mxu0 0
      %1761 = vmatprep.subr.bf16.mxu0 0
      %1762 = vmatpush2.bf16.msra.mxu0 0
      %1763 = vmatprep.subr.bf16.mxu0 0
      %1764 = vmatpush2.bf16.msra.mxu0 0
      %1765 = vmatprep.mubr.bf16.mxu0 0
      %1766 = vmatmul.mubr.bf16.gmra.mxu0 %v1707
      %v1767 = vpop.f32.mrf.mxu0
      %v1768 = vadd.f32 0.0, %v1767
      %v1769 = vpop.f32.mrf.mxu0
      %v1770 = vpop.f32.mrf.mxu0
      %v1771 = vadd.f32 0.0, %v1770
      %v1772 = vpop.f32.mrf.mxu0
      %1773 = vmatprep.mubr.bf16.mxu0 0
      %1774 = vmatmul.mubr.bf16.gmra.mxu0 %v1710
      %v1775 = vpop.f32.mrf.mxu0
      %v1776 = vadd.f32 0.0, %v1775
      %v1777 = vpop.f32.mrf.mxu0
      %v1778 = vpop.f32.mrf.mxu0
      %v1779 = vadd.f32 0.0, %v1778
      %v1780 = vpop.f32.mrf.mxu0
      %1781 = vmatprep.mubr.bf16.mxu0 0
      %1782 = vmatmul.mubr.bf16.gmra.mxu0 %v1713
      %v1783 = vpop.f32.mrf.mxu0
      %v1784 = vadd.f32 0.0, %v1783
      %v1785 = vpop.f32.mrf.mxu0
      %v1786 = vpop.f32.mrf.mxu0
      %v1787 = vadd.f32 0.0, %v1786
      %v1788 = vpop.f32.mrf.mxu0
      %1789 = vmatprep.mubr.bf16.mxu0 0
      %1790 = vmatmul.mubr.bf16.gmra.mxu0 %v1716
      %v1791 = vpop.f32.mrf.mxu0
      %v1792 = vadd.f32 0.0, %v1791
      %v1793 = vpop.f32.mrf.mxu0
      %v1794 = vpop.f32.mrf.mxu0
      %v1795 = vadd.f32 0.0, %v1794
      %v1796 = vpop.f32.mrf.mxu0
      %1797 = vmatprep.mubr.bf16.mxu0 0
      %1798 = vmatmul.mubr.bf16.gmra.mxu0 %v1719
      %v1799 = vpop.f32.mrf.mxu0
      %v1800 = vadd.f32 0.0, %v1799
      %v1801 = vpop.f32.mrf.mxu0
      %v1802 = vpop.f32.mrf.mxu0
      %v1803 = vadd.f32 0.0, %v1802
      %v1804 = vpop.f32.mrf.mxu0
      %1805 = vmatprep.mubr.bf16.mxu0 0
      %1806 = vmatmul.mubr.bf16.gmra.mxu0 %v1722
      %v1807 = vpop.f32.mrf.mxu0
      %v1808 = vadd.f32 0.0, %v1807
      %v1809 = vpop.f32.mrf.mxu0
      %v1810 = vpop.f32.mrf.mxu0
      %v1811 = vadd.f32 0.0, %v1810
      %v1812 = vpop.f32.mrf.mxu0
      %1813 = vmatprep.mubr.bf16.mxu0 0
      %1814 = vmatmul.mubr.bf16.gmra.mxu0 %v1725
      %v1815 = vpop.f32.mrf.mxu0
      %v1816 = vadd.f32 0.0, %v1815
      %v1817 = vpop.f32.mrf.mxu0
      %v1818 = vpop.f32.mrf.mxu0
      %v1819 = vadd.f32 0.0, %v1818
      %v1820 = vpop.f32.mrf.mxu0
      %1821 = vmatprep.mubr.bf16.mxu0 0
      %1822 = vmatmul.mubr.bf16.gmra.mxu0 %v1728
      %v1823 = vpop.f32.mrf.mxu0
      %v1824 = vadd.f32 0.0, %v1823
      %v1825 = vpop.f32.mrf.mxu0
      %v1826 = vpop.f32.mrf.mxu0
      %v1827 = vadd.f32 0.0, %v1826
      %v1828 = vpop.f32.mrf.mxu0
      %1829 = vdwg.mxu0
      %v1830 = vadd.f32 %v1671, %v1768
      %v1831 = vadd.f32 %v1672, %v1771
      %v1832 = vadd.f32 %v1673, %v1776
      %v1833 = vadd.f32 %v1674, %v1779
      %v1834 = vadd.f32 %v1675, %v1784
      %v1835 = vadd.f32 %v1676, %v1787
      %v1836 = vadd.f32 %v1677, %v1792
      %v1837 = vadd.f32 %v1678, %v1795
      %v1838 = vadd.f32 %v1679, %v1800
      %v1839 = vadd.f32 %v1680, %v1803
      %v1840 = vadd.f32 %v1681, %v1808
      %v1841 = vadd.f32 %v1682, %v1811
      %v1842 = vadd.f32 %v1683, %v1816
      %v1843 = vadd.f32 %v1684, %v1819
      %v1844 = vadd.f32 %v1685, %v1824
      %v1845 = vadd.f32 %v1686, %v1827
      %v1846 = vld [vmem:[%s7] sm:$0x1]
      %v1848 = vlaneseq
      %v1849 = vshrl.u32 %v1848, 7
      %v1850 = vsub.s32 0, %v1849
      %v1851 = vrot.slane %v1846, %v1850
      %v1853 = vadd.f32 %v1830, %v1851
      %v1854 = vadd.f32 %v1831, %v1851
      %v1855 = vadd.f32 %v1832, %v1851
      %v1856 = vadd.f32 %v1833, %v1851
      %v1857 = vadd.f32 %v1834, %v1851
      %v1858 = vadd.f32 %v1835, %v1851
      %v1859 = vadd.f32 %v1836, %v1851
      %v1860 = vadd.f32 %v1837, %v1851
      %v1861 = vadd.f32 %v1838, %v1851
      %v1862 = vadd.f32 %v1839, %v1851
      %v1863 = vadd.f32 %v1840, %v1851
      %v1864 = vadd.f32 %v1841, %v1851
      %v1865 = vadd.f32 %v1842, %v1851
      %v1866 = vadd.f32 %v1843, %v1851
      %v1867 = vadd.f32 %v1844, %v1851
      %v1868 = vadd.f32 %v1845, %v1851
      %1869 = vxpose.xlu0.b32.start [1/16] %v1853, 128
      %1870 = vxpose.xlu0.b32.cont [2/16] %v1854, 128
      %1871 = vxpose.xlu0.b32.cont [3/16] %v1855, 128
      %1872 = vxpose.xlu0.b32.cont [4/16] %v1856, 128
      %1873 = vxpose.xlu0.b32.cont [5/16] %v1857, 128
      %1874 = vxpose.xlu0.b32.cont [6/16] %v1858, 128
      %1875 = vxpose.xlu0.b32.cont [7/16] %v1859, 128
      %1876 = vxpose.xlu0.b32.cont [8/16] %v1860, 128
      %1877 = vxpose.xlu0.b32.cont [9/16] %v1861, 128
      %1878 = vxpose.xlu0.b32.cont [10/16] %v1862, 128
      %1879 = vxpose.xlu0.b32.cont [11/16] %v1863, 128
      %1880 = vxpose.xlu0.b32.cont [12/16] %v1864, 128
      %1881 = vxpose.xlu0.b32.cont [13/16] %v1865, 128
      %1882 = vxpose.xlu0.b32.cont [14/16] %v1866, 128
      %1883 = vxpose.xlu0.b32.cont [15/16] %v1867, 128
      %1884 = vxpose.xlu0.b32.end [16/16] %v1868, 128
      %v1885 = vpop.trf.xlu0
      %v1886 = vpop.trf.xlu0
      %v1887 = vpop.trf.xlu0
      %v1888 = vpop.trf.xlu0
      %v1889 = vpop.trf.xlu0
      %v1890 = vpop.trf.xlu0
      %v1891 = vpop.trf.xlu0
      %v1892 = vpop.trf.xlu0
      %v1893 = vpop.trf.xlu0
      %v1894 = vpop.trf.xlu0
      %v1895 = vpop.trf.xlu0
      %v1896 = vpop.trf.xlu0
      %v1897 = vpop.trf.xlu0
      %v1898 = vpop.trf.xlu0
      %v1899 = vpop.trf.xlu0
      %v1900 = vpop.trf.xlu0
      %1901 = vst [vmem:[%s391] sm:$0xff] %v1885
      %1902 = vst [vmem:[%s391 + $0x8] sm:$0xff] %v1886
      %1903 = vst [vmem:[%s391 + $0x10] sm:$0xff] %v1887
      %1904 = vst [vmem:[%s391 + $0x18] sm:$0xff] %v1888
      %1905 = vst [vmem:[%s391 + $0x20] sm:$0xff] %v1889
      %1906 = vst [vmem:[%s391 + $0x28] sm:$0xff] %v1890
      %1907 = vst [vmem:[%s391 + $0x30] sm:$0xff] %v1891
      %1908 = vst [vmem:[%s391 + $0x38] sm:$0xff] %v1892
      %1909 = vst [vmem:[%s391 + $0x40] sm:$0xff] %v1893
      %1910 = vst [vmem:[%s391 + $0x48] sm:$0xff] %v1894
      %1911 = vst [vmem:[%s391 + $0x50] sm:$0xff] %v1895
      %1912 = vst [vmem:[%s391 + $0x58] sm:$0xff] %v1896
      %1913 = vst [vmem:[%s391 + $0x60] sm:$0xff] %v1897
      %1914 = vst [vmem:[%s391 + $0x68] sm:$0xff] %v1898
      %1915 = vst [vmem:[%s391 + $0x70] sm:$0xff] %v1899
      %1916 = vst [vmem:[%s391 + $0x78] sm:$0xff] %v1900
      %p1917 = scmp.lt.s32.totalorder %s23, 1
      %s1918 = scalar_select %p1917, %s23, 1
      %p1919 = scmp.lt.s32.totalorder %s24, 0
      %s1920 = scalar_select %p1919, %s24, 0
      %s1921 = smul.addr %s1918, 16
      %s1922 = sadd.s32 %s1920, %s1921
      %s1923 = smul.addr %s1922, 8
      %s1924 = scalar_lea.vmem %s8, %s1923
      // Predicated region
      $region53: #{residual_block_forward.1} parent=51 // pred_check
        %p1925 = pneg %p237
      $region54: #{residual_block_forward.1} parent=51 // pred_check_branch
        %1927 = sbr.rel (%p1925) target = $region56
      $region55: #{residual_block_forward.1} parent=51 // pred_region
        _
      $region56: #{residual_block_forward.1} parent=51 // pred_fallthru
        _
    $region52: #{residual_block_forward.1} parent=5 // pred_fallthru
      _
    %p1928 = scmp.le.s32.totalorder 2, %s14
    // Predicated region
    $region57: #{residual_block_forward.1} parent=5 // pred_check
      %p1929 = pneg %p1928
    $region58: #{residual_block_forward.1} parent=5 // pred_check_branch
      %1931 = sbr.rel (%p1929) target = $region60
    $region59: #{residual_block_forward.1} parent=5 // pred_region
      %s1932 = ssub.s32 %s14, 2
      // Predicated region
      $region61: #{residual_block_forward.1} parent=59 // pred_check
        %p1933 = pneg %p243
      $region62: #{residual_block_forward.1} parent=59 // pred_check_branch
        %1935 = sbr.rel (%p1933) target = $region64
      $region63: #{residual_block_forward.1} parent=59 // pred_region
        %p1936 = scmp.lt.s32.totalorder %s25, 1
        %s1937 = scalar_select %p1936, %s25, 1
        %p1938 = scmp.lt.s32.totalorder %s26, 0
        %s1939 = scalar_select %p1938, %s26, 0
        %s1940 = smul.addr %s1937, 16
        %s1941 = sadd.s32 %s1939, %s1940
        %s1942 = smul.addr %s1941, 8
        %s1943 = scalar_lea.vmem %s8, %s1942
      $region64: #{residual_block_forward.1} parent=59 // pred_fallthru
        _
    $region60: #{residual_block_forward.1} parent=5 // pred_fallthru
      _
  $region6: #{residual_block_forward.1} parent=0 // loop_footer
    %s18 = sadd.s32 1, %s14
  $region7: #{residual_block_forward.1} parent=0 // loop_footer_branch
    %13 = sbr.rel target = $region3
  $region8: #{residual_block_forward.1} parent=0 // loop_exit
    _

</llo_original>
